<compile_context>
chip_gen: v7x
topology: tpu7x:2x2x1
jax: 0.10.0
libtpu: 0.0.40
codegen_flags: <defaults>
</compile_context>

<pallas_src>
import functools

import jax
import jax.numpy as jnp
from jax.experimental import pallas as pl
from jax.experimental.pallas import tpu as pltpu

HIDDEN = 16


def _round_up(x, m):
    return ((x + m - 1) // m) * m


def _choose_tiles(n):
    """(n_pad, tm, tk): fine-grained padding (256), tiles that divide n_pad and
    are (8,128)-aligned, >= 2 row tiles (v7x dual-TC), A block <= 1024x2048 int8."""
    n_pad = _round_up(max(n, 1), 256)
    tk = min(n_pad, 2048)
    while n_pad % tk:
        tk -= 128
    tm = min(n_pad // 2, 1024)
    while n_pad % tm:
        tm -= 128
    return n_pad, tm, tk


# ------------- propagation kernel: OUT = relu(diag(dinv) (A+I) diag(dinv) HW + b) -------------
def _prop_kernel(a_ref, hw_ref, dk_ref, di_ref, b_ref, o_ref, acc_ref):
    k = pl.program_id(1)

    @pl.when(k == 0)
    def _():
        acc_ref[...] = jnp.zeros_like(acc_ref)

    a = a_ref[...].astype(jnp.bfloat16)                     # int8 0/1 -> bf16 (VPU, exact)
    hw = (hw_ref[...] * dk_ref[...]).astype(jnp.bfloat16)   # f32 dinv scaling of the tiny slab
    acc_ref[...] += jnp.dot(a, hw, preferred_element_type=jnp.float32)

    @pl.when(k == pl.num_programs(1) - 1)
    def _():
        o_ref[...] = jnp.maximum(acc_ref[...] * di_ref[...] + b_ref[...], 0.0)


def _propagate(adj_i8, hw, dinv, b, *, tm, tk):
    n_pad = adj_i8.shape[0]
    hid = hw.shape[1]
    grid = (n_pad // tm, n_pad // tk)
    return pl.pallas_call(
        _prop_kernel,
        out_shape=jax.ShapeDtypeStruct((n_pad, hid), jnp.float32),
        grid_spec=pltpu.PrefetchScalarGridSpec(
            num_scalar_prefetch=0,
            grid=grid,
            in_specs=[
                pl.BlockSpec((tm, tk), lambda i, k: (i, k)),    # (A+I) int8 block (dominant stream)
                pl.BlockSpec((tk, hid), lambda i, k: (k, 0)),   # HW slab (16 cols, f32)
                pl.BlockSpec((tk, 1), lambda i, k: (k, 0)),     # dinv for K rows
                pl.BlockSpec((tm, 1), lambda i, k: (i, 0)),     # dinv for output rows
                pl.BlockSpec((1, hid), lambda i, k: (0, 0)),    # bias (resident)
            ],
            out_specs=pl.BlockSpec((tm, hid), lambda i, k: (i, 0)),
            scratch_shapes=[pltpu.VMEM((tm, hid), jnp.float32)],
        ),
        compiler_params=pltpu.CompilerParams(
            dimension_semantics=("parallel", "arbitrary"),
            vmem_limit_bytes=32 * 1024 * 1024,
        ),
    )(adj_i8, hw, dinv, dinv, b)


# ------------- head kernel: sigmoid((P @ H2) @ Wl + bl), K-tiled over n_pad -------------
def _head_kernel(p_ref, h_ref, wl_ref, bl_ref, o_ref, acc_ref):
    k = pl.program_id(0)

    @pl.when(k == 0)
    def _():
        acc_ref[...] = jnp.zeros_like(acc_ref)

    acc_ref[...] += jnp.dot(p_ref[...], h_ref[...], preferred_element_type=jnp.float32)

    @pl.when(k == pl.num_programs(0) - 1)
    def _():
        logits = jnp.dot(acc_ref[...], wl_ref[...],
                         preferred_element_type=jnp.float32) + bl_ref[...]
        o_ref[...] = jax.nn.sigmoid(logits)


def _head(pool, h2, wl, bl, *, tk):
    g, n_pad = pool.shape
    hid = h2.shape[1]
    return pl.pallas_call(
        _head_kernel,
        out_shape=jax.ShapeDtypeStruct((g, 1), jnp.float32),
        grid_spec=pltpu.PrefetchScalarGridSpec(
            num_scalar_prefetch=0,
            grid=(n_pad // tk,),
            in_specs=[
                pl.BlockSpec((g, tk), lambda k: (0, k)),
                pl.BlockSpec((tk, hid), lambda k: (k, 0)),
                pl.BlockSpec((hid, 1), lambda k: (0, 0)),
                pl.BlockSpec((1, 1), lambda k: (0, 0)),
            ],
            out_specs=pl.BlockSpec((g, 1), lambda k: (0, 0)),
            scratch_shapes=[pltpu.VMEM((g, hid), jnp.float32)],
        ),
        compiler_params=pltpu.CompilerParams(
            dimension_semantics=("arbitrary",),
        ),
    )(pool, h2, wl, bl)


@functools.partial(jax.jit, static_argnames=("num_graphs",))
def gcn_forward(params, x, edge_index, batch, num_graphs):
    n, f_in = x.shape
    n_pad, tm, tk = _choose_tiles(n)

    # --- (A + I) as int8 built directly in the padded buffer: one scatter, no f32 N^2 passes ---
    # TODO(synk): for very large graphs build (A+I) blockwise from the sorted edge
    # list instead of materializing an N^2 dense scatter in the wrapper.
    src, dst = edge_index[0], edge_index[1]
    diag = jnp.arange(n, dtype=src.dtype)
    rows = jnp.concatenate([src, diag])
    cols = jnp.concatenate([dst, diag])
    adj = jnp.zeros((n_pad, n_pad), jnp.int8).at[rows, cols].set(1)

    # D^-1/2 stays in f32 and is applied inside the kernel (not baked into A).
    # Padded rows have deg=0 -> dinv=0; their garbage activations never reach a
    # real row (A columns are 0) nor the pooled output (pool columns are 0).
    deg = jnp.sum(adj, axis=1, dtype=jnp.float32)
    dinv = jnp.where(deg > 0, jax.lax.rsqrt(deg), 0.0).reshape(n_pad, 1)

    # --- mean-pooling matrix P (G, n_pad), f32 (tiny vs the A stream) ---
    onehot = (batch[None, :] == jnp.arange(num_graphs, dtype=batch.dtype)[:, None])
    onehot = onehot.astype(jnp.float32)
    counts = jnp.maximum(jnp.sum(onehot, axis=1, keepdims=True), 1.0)
    pool = jnp.pad(onehot / counts, ((0, 0), (0, n_pad - n)))

    x_p = jnp.pad(x.astype(jnp.float32), ((0, n_pad - n), (0, 0)))
    b1 = params["b1"].reshape(1, HIDDEN).astype(jnp.float32)
    b2 = params["b2"].reshape(1, HIDDEN).astype(jnp.float32)
    wl = params["wl"].astype(jnp.float32)
    bl = params["bl"].reshape(1, 1).astype(jnp.float32)

    # H @ W precomputed once per layer in XLA (tiny (n_pad, F) @ (F, 16)).
    hw1 = x_p @ params["w1"].astype(jnp.float32)
    h1 = _propagate(adj, hw1, dinv, b1, tm=tm, tk=tk)       # (n_pad, 16) f32

    hw2 = h1 @ params["w2"].astype(jnp.float32)
    h2 = _propagate(adj, hw2, dinv, b2, tm=tm, tk=tk)       # (n_pad, 16) f32

    out = _head(pool, h2, wl, bl, tk=tk)                    # (G, 1) f32
    return out[:, 0]                                        # == x.squeeze(1)


def gcn_reference(params, x, edge_index, batch, num_graphs):
    """Pure-JAX f32 reference matching the PyTorch module semantics."""
    n = x.shape[0]
    src, dst = edge_index[0], edge_index[1]
    adj = jnp.zeros((n, n), jnp.float32).at[src, dst].set(1.0)
    adj = jnp.maximum(adj, jnp.eye(n, dtype=jnp.float32))
    deg = jnp.sum(adj, axis=1)
    dinv = jnp.where(deg > 0, 1.0 / jnp.sqrt(deg), 0.0)
    a_hat = dinv[:, None] * adj * dinv[None, :]
    h1 = jnp.maximum(a_hat @ (x @ params["w1"]) + params["b1"], 0.0)
    h2 = jnp.maximum(a_hat @ (h1 @ params["w2"]) + params["b2"], 0.0)
    onehot = (batch[None, :] == jnp.arange(num_graphs, dtype=batch.dtype)[:, None])
    onehot = onehot.astype(jnp.float32)
    counts = jnp.maximum(jnp.sum(onehot, axis=1, keepdims=True), 1.0)
    pooled = (onehot / counts) @ h2
    return jax.nn.sigmoid(pooled @ params["wl"] + params["bl"])[:, 0]


def init_params(key, f_in):
    k1, k2, k3, k4, k5, k6 = jax.random.split(key, 6)
    s1 = 1.0 / jnp.sqrt(jnp.float32(f_in))
    s2 = 1.0 / jnp.sqrt(jnp.float32(HIDDEN))
    return {
        "w1": jax.random.uniform(k1, (f_in, HIDDEN), jnp.float32, -s1, s1),
        "b1": jax.random.uniform(k2, (HIDDEN,), jnp.float32, -s1, s1),
        "w2": jax.random.uniform(k3, (HIDDEN, HIDDEN), jnp.float32, -s2, s2),
        "b2": jax.random.uniform(k4, (HIDDEN,), jnp.float32, -s2, s2),
        "wl": jax.random.uniform(k5, (HIDDEN, 1), jnp.float32, -s2, s2),
        "bl": jax.random.uniform(k6, (1,), jnp.float32, -s2, s2),
    }


if __name__ == "__main__":
    key = jax.random.PRNGKey(0)

    # Small synthetic "batch of graphs": 2 graphs, 8 nodes each, ring topology.
    NUM_GRAPHS = 2
    NODES_PER_GRAPH = 8
    N = NUM_GRAPHS * NODES_PER_GRAPH
    F_IN = 7   # MUTAG num_node_features

    src, dst = [], []
    for g in range(NUM_GRAPHS):
        base = g * NODES_PER_GRAPH
        for i in range(NODES_PER_GRAPH):
            a, b = base + i, base + (i + 1) % NODES_PER_GRAPH
            src += [a, b]
            dst += [b, a]
    edge_index = jnp.array([src, dst], dtype=jnp.int32)
    batch = jnp.repeat(jnp.arange(NUM_GRAPHS, dtype=jnp.int32), NODES_PER_GRAPH)

    kx, kp = jax.random.split(key)
    x = jax.random.normal(kx, (N, F_IN), jnp.float32)
    params = init_params(kp, F_IN)

    out = gcn_forward(params, x, edge_index, batch, NUM_GRAPHS)
    jax.block_until_ready(out)
    assert out.shape == (NUM_GRAPHS,)

    ref = gcn_reference(params, x, edge_index, batch, NUM_GRAPHS)
    assert jnp.allclose(out, ref, atol=2e-2), (out, ref)   # bf16-stream tolerance

    print("KERNEL_OK")
</pallas_src>

<mosaic_0001>
module attributes {stable_mosaic.version = 11 : i64} {
  func.func @_prop_kernel(%arg0: i32, %arg1: i32, %arg2: memref<128x256xi8, #tpu.memory_space<vmem>>, %arg3: memref<256x16xf32, #tpu.memory_space<vmem>>, %arg4: memref<256x1xf32, #tpu.memory_space<vmem>>, %arg5: memref<128x1xf32, #tpu.memory_space<vmem>>, %arg6: memref<1x16xf32, #tpu.memory_space<vmem>>, %arg7: memref<128x16xf32, #tpu.memory_space<vmem>>, %arg8: memref<128x16xf32, #tpu.memory_space<vmem>>) attributes {dimension_semantics = [#tpu.dimension_semantics<parallel>, #tpu.dimension_semantics<arbitrary>], iteration_bounds = array<i64: 2, 1>, scalar_prefetch = 0 : i64, scratch_operands = 1 : i64, tpu.core_type = #tpu.core_type<tc>, window_params = [{transform_indices = @transform_0, window_bounds = array<i64: 128, 256>}, {transform_indices = @transform_1, window_bounds = array<i64: 256, 16>}, {transform_indices = @transform_2, window_bounds = array<i64: 256, 1>}, {transform_indices = @transform_3, window_bounds = array<i64: 128, 1>}, {pipeline_mode = #tpu.pipeline_mode<synchronous>, transform_indices = @transform_4, window_bounds = array<i64: 1, 16>}, {transform_indices = @transform_5, window_bounds = array<i64: 128, 16>}]} {
    %c0_i32 = arith.constant 0 : i32
    %0 = arith.cmpi eq, %arg1, %c0_i32 : i32
    %1 = arith.extui %0 : i1 to i32
    %c0_i32_0 = arith.constant 0 : i32
    %2 = arith.cmpi ne, %1, %c0_i32_0 : i32
    scf.if %2 {
      %cst_12 = arith.constant 0.000000e+00 : f32
      %17 = vector.broadcast %cst_12 : f32 to vector<128x16xf32>
      %c0_13 = arith.constant 0 : index
      %c0_14 = arith.constant 0 : index
      %18 = vector.load %arg8[%c0_13, %c0_14] : memref<128x16xf32, #tpu.memory_space<vmem>>, vector<128x16xf32>
      tpu.vector_store %arg8[%c0_13, %c0_14], %17 {strides = array<i32>} : memref<128x16xf32, #tpu.memory_space<vmem>>, vector<128x16xf32>,
    } else {
    }
    %c0 = arith.constant 0 : index
    %c0_1 = arith.constant 0 : index
    %3 = vector.load %arg2[%c0, %c0_1] : memref<128x256xi8, #tpu.memory_space<vmem>>, vector<128x256xi8>
    %4 = arith.sitofp %3 : vector<128x256xi8> to vector<128x256xbf16>
    %c0_2 = arith.constant 0 : index
    %c0_3 = arith.constant 0 : index
    %5 = vector.load %arg3[%c0_2, %c0_3] : memref<256x16xf32, #tpu.memory_space<vmem>>, vector<256x16xf32>
    %c0_4 = arith.constant 0 : index
    %c0_5 = arith.constant 0 : index
    %6 = vector.load %arg4[%c0_4, %c0_5] : memref<256x1xf32, #tpu.memory_space<vmem>>, vector<256x1xf32>
    %7 = vector.broadcast %6 : vector<256x1xf32> to vector<256x16xf32>
    %8 = arith.mulf %5, %7 : vector<256x16xf32>
    %9 = arith.truncf %8 : vector<256x16xf32> to vector<256x16xbf16>
    %c0_6 = arith.constant 0 : index
    %c0_7 = arith.constant 0 : index
    %10 = vector.load %arg8[%c0_6, %c0_7] : memref<128x16xf32, #tpu.memory_space<vmem>>, vector<128x16xf32>
    %cst = arith.constant dense<0.000000e+00> : vector<128x16xf32>
    %11 = tpu.matmul %4, %9, %cst {dimension_numbers = #tpu.dot_dimension_numbers<[1], [0], [0], [1], [0, 0, 1, 1], [], []>} : vector<128x256xbf16>, vector<256x16xbf16>, vector<128x16xf32> -> vector<128x16xf32>
    %12 = arith.addf %10, %11 : vector<128x16xf32>
    %c0_8 = arith.constant 0 : index
    %c0_9 = arith.constant 0 : index
    %13 = vector.load %arg8[%c0_8, %c0_9] : memref<128x16xf32, #tpu.memory_space<vmem>>, vector<128x16xf32>
    tpu.vector_store %arg8[%c0_8, %c0_9], %12 {strides = array<i32>} : memref<128x16xf32, #tpu.memory_space<vmem>>, vector<128x16xf32>,
    %c0_i32_10 = arith.constant 0 : i32
    %14 = arith.cmpi eq, %arg1, %c0_i32_10 : i32
    %15 = arith.extui %14 : i1 to i32
    %c0_i32_11 = arith.constant 0 : i32
    %16 = arith.cmpi ne, %15, %c0_i32_11 : i32
    scf.if %16 {
      %c0_12 = arith.constant 0 : index
      %c0_13 = arith.constant 0 : index
      %17 = vector.load %arg8[%c0_12, %c0_13] : memref<128x16xf32, #tpu.memory_space<vmem>>, vector<128x16xf32>
      %c0_14 = arith.constant 0 : index
      %c0_15 = arith.constant 0 : index
      %18 = vector.load %arg5[%c0_14, %c0_15] : memref<128x1xf32, #tpu.memory_space<vmem>>, vector<128x1xf32>
      %19 = vector.broadcast %18 : vector<128x1xf32> to vector<128x16xf32>
      %20 = arith.mulf %17, %19 : vector<128x16xf32>
      %c0_16 = arith.constant 0 : index
      %c0_17 = arith.constant 0 : index
      %21 = vector.load %arg6[%c0_16, %c0_17] : memref<1x16xf32, #tpu.memory_space<vmem>>, vector<1x16xf32>
      %22 = vector.broadcast %21 : vector<1x16xf32> to vector<128x16xf32>
      %23 = arith.addf %20, %22 : vector<128x16xf32>
      %cst_18 = arith.constant 0.000000e+00 : f32
      %24 = vector.broadcast %cst_18 : f32 to vector<128x16xf32>
      %25 = arith.maximumf %23, %24 : vector<128x16xf32>
      %c0_19 = arith.constant 0 : index
      %c0_20 = arith.constant 0 : index
      %26 = vector.load %arg7[%c0_19, %c0_20] : memref<128x16xf32, #tpu.memory_space<vmem>>, vector<128x16xf32>
      tpu.vector_store %arg7[%c0_19, %c0_20], %25 {strides = array<i32>} : memref<128x16xf32, #tpu.memory_space<vmem>>, vector<128x16xf32>,
    } else {
    }
    return
  }
  func.func @transform_0(%arg0: i32, %arg1: i32) -> (i32, i32) {
    %c0_i32 = arith.constant 0 : i32
    return %arg0, %arg1 : i32, i32
  }
  func.func @transform_1(%arg0: i32, %arg1: i32) -> (i32, i32) {
    %c0_i32 = arith.constant 0 : i32
    %c0_i32_0 = arith.constant 0 : i32
    return %arg1, %c0_i32 : i32, i32
  }
  func.func @transform_2(%arg0: i32, %arg1: i32) -> (i32, i32) {
    %c0_i32 = arith.constant 0 : i32
    %c0_i32_0 = arith.constant 0 : i32
    return %arg1, %c0_i32 : i32, i32
  }
  func.func @transform_3(%arg0: i32, %arg1: i32) -> (i32, i32) {
    %c0_i32 = arith.constant 0 : i32
    %c0_i32_0 = arith.constant 0 : i32
    return %arg0, %c0_i32 : i32, i32
  }
  func.func @transform_4(%arg0: i32, %arg1: i32) -> (i32, i32) {
    %c0_i32 = arith.constant 0 : i32
    %c0_i32_0 = arith.constant 0 : i32
    %c0_i32_1 = arith.constant 0 : i32
    return %c0_i32, %c0_i32_0 : i32, i32
  }
  func.func @transform_5(%arg0: i32, %arg1: i32) -> (i32, i32) {
    %c0_i32 = arith.constant 0 : i32
    %c0_i32_0 = arith.constant 0 : i32
    return %arg0, %c0_i32 : i32, i32
  }
}

module attributes {stable_mosaic.version = 11 : i64} {
  func.func @_head_kernel(%arg0: i32, %arg1: memref<2x256xf32, #tpu.memory_space<vmem>>, %arg2: memref<256x16xf32, #tpu.memory_space<vmem>>, %arg3: memref<16x1xf32, #tpu.memory_space<vmem>>, %arg4: memref<1x1xf32, #tpu.memory_space<vmem>>, %arg5: memref<2x1xf32, #tpu.memory_space<vmem>>, %arg6: memref<2x16xf32, #tpu.memory_space<vmem>>) attributes {dimension_semantics = [#tpu.dimension_semantics<arbitrary>], iteration_bounds = array<i64: 1>, scalar_prefetch = 0 : i64, scratch_operands = 1 : i64, tpu.core_type = #tpu.core_type<tc>, window_params = [{transform_indices = @transform_0, window_bounds = array<i64: 2, 256>}, {transform_indices = @transform_1, window_bounds = array<i64: 256, 16>}, {pipeline_mode = #tpu.pipeline_mode<synchronous>, transform_indices = @transform_2, window_bounds = array<i64: 16, 1>}, {pipeline_mode = #tpu.pipeline_mode<synchronous>, transform_indices = @transform_3, window_bounds = array<i64: 1, 1>}, {pipeline_mode = #tpu.pipeline_mode<synchronous>, transform_indices = @transform_4, window_bounds = array<i64: 2, 1>}]} {
    %c0_i32 = arith.constant 0 : i32
    %0 = arith.cmpi eq, %arg0, %c0_i32 : i32
    %1 = arith.extui %0 : i1 to i32
    %c0_i32_0 = arith.constant 0 : i32
    %2 = arith.cmpi ne, %1, %c0_i32_0 : i32
    scf.if %2 {
      %cst_10 = arith.constant 0.000000e+00 : f32
      %12 = vector.broadcast %cst_10 : f32 to vector<2x16xf32>
      %c0_11 = arith.constant 0 : index
      %c0_12 = arith.constant 0 : index
      %13 = vector.load %arg6[%c0_11, %c0_12] : memref<2x16xf32, #tpu.memory_space<vmem>>, vector<2x16xf32>
      tpu.vector_store %arg6[%c0_11, %c0_12], %12 {strides = array<i32>} : memref<2x16xf32, #tpu.memory_space<vmem>>, vector<2x16xf32>,
    } else {
    }
    %c0 = arith.constant 0 : index
    %c0_1 = arith.constant 0 : index
    %3 = vector.load %arg6[%c0, %c0_1] : memref<2x16xf32, #tpu.memory_space<vmem>>, vector<2x16xf32>
    %c0_2 = arith.constant 0 : index
    %c0_3 = arith.constant 0 : index
    %4 = vector.load %arg1[%c0_2, %c0_3] : memref<2x256xf32, #tpu.memory_space<vmem>>, vector<2x256xf32>
    %c0_4 = arith.constant 0 : index
    %c0_5 = arith.constant 0 : index
    %5 = vector.load %arg2[%c0_4, %c0_5] : memref<256x16xf32, #tpu.memory_space<vmem>>, vector<256x16xf32>
    %cst = arith.constant dense<0.000000e+00> : vector<2x16xf32>
    %6 = tpu.matmul %4, %5, %cst {dimension_numbers = #tpu.dot_dimension_numbers<[1], [0], [0], [1], [0, 0, 1, 1], [], []>} : vector<2x256xf32>, vector<256x16xf32>, vector<2x16xf32> -> vector<2x16xf32>
    %7 = arith.addf %3, %6 : vector<2x16xf32>
    %c0_6 = arith.constant 0 : index
    %c0_7 = arith.constant 0 : index
    %8 = vector.load %arg6[%c0_6, %c0_7] : memref<2x16xf32, #tpu.memory_space<vmem>>, vector<2x16xf32>
    tpu.vector_store %arg6[%c0_6, %c0_7], %7 {strides = array<i32>} : memref<2x16xf32, #tpu.memory_space<vmem>>, vector<2x16xf32>,
    %c0_i32_8 = arith.constant 0 : i32
    %9 = arith.cmpi eq, %arg0, %c0_i32_8 : i32
    %10 = arith.extui %9 : i1 to i32
    %c0_i32_9 = arith.constant 0 : i32
    %11 = arith.cmpi ne, %10, %c0_i32_9 : i32
    scf.if %11 {
      %c0_10 = arith.constant 0 : index
      %c0_11 = arith.constant 0 : index
      %12 = vector.load %arg6[%c0_10, %c0_11] : memref<2x16xf32, #tpu.memory_space<vmem>>, vector<2x16xf32>
      %c0_12 = arith.constant 0 : index
      %c0_13 = arith.constant 0 : index
      %13 = vector.load %arg3[%c0_12, %c0_13] : memref<16x1xf32, #tpu.memory_space<vmem>>, vector<16x1xf32>
      %cst_14 = arith.constant dense<0.000000e+00> : vector<2x1xf32>
      %14 = tpu.matmul %12, %13, %cst_14 {dimension_numbers = #tpu.dot_dimension_numbers<[1], [0], [0], [1], [0, 0, 1, 1], [], []>} : vector<2x16xf32>, vector<16x1xf32>, vector<2x1xf32> -> vector<2x1xf32>
      %c0_15 = arith.constant 0 : index
      %c0_16 = arith.constant 0 : index
      %15 = vector.load %arg4[%c0_15, %c0_16] : memref<1x1xf32, #tpu.memory_space<vmem>>, vector<1x1xf32>
      %16 = vector.broadcast %15 : vector<1x1xf32> to vector<2x1xf32>
      %17 = arith.addf %14, %16 : vector<2x1xf32>
      %18 = arith.negf %17 : vector<2x1xf32>
      %19 = math.exp %18 : vector<2x1xf32>
      %cst_17 = arith.constant 1.000000e+00 : f32
      %20 = vector.broadcast %cst_17 : f32 to vector<2x1xf32>
      %21 = arith.addf %20, %19 : vector<2x1xf32>
      %22 = arith.divf %20, %21 : vector<2x1xf32>
      %c0_18 = arith.constant 0 : index
      %c0_19 = arith.constant 0 : index
      %23 = vector.load %arg5[%c0_18, %c0_19] : memref<2x1xf32, #tpu.memory_space<vmem>>, vector<2x1xf32>
      tpu.vector_store %arg5[%c0_18, %c0_19], %22 {strides = array<i32>} : memref<2x1xf32, #tpu.memory_space<vmem>>, vector<2x1xf32>,
    } else {
    }
    return
  }
  func.func @transform_0(%arg0: i32) -> (i32, i32) {
    %c0_i32 = arith.constant 0 : i32
    %c0_i32_0 = arith.constant 0 : i32
    return %c0_i32, %arg0 : i32, i32
  }
  func.func @transform_1(%arg0: i32) -> (i32, i32) {
    %c0_i32 = arith.constant 0 : i32
    %c0_i32_0 = arith.constant 0 : i32
    return %arg0, %c0_i32 : i32, i32
  }
  func.func @transform_2(%arg0: i32) -> (i32, i32) {
    %c0_i32 = arith.constant 0 : i32
    %c0_i32_0 = arith.constant 0 : i32
    %c0_i32_1 = arith.constant 0 : i32
    return %c0_i32, %c0_i32_0 : i32, i32
  }
  func.func @transform_3(%arg0: i32) -> (i32, i32) {
    %c0_i32 = arith.constant 0 : i32
    %c0_i32_0 = arith.constant 0 : i32
    %c0_i32_1 = arith.constant 0 : i32
    return %c0_i32, %c0_i32_0 : i32, i32
  }
  func.func @transform_4(%arg0: i32) -> (i32, i32) {
    %c0_i32 = arith.constant 0 : i32
    %c0_i32_0 = arith.constant 0 : i32
    %c0_i32_1 = arith.constant 0 : i32
    return %c0_i32, %c0_i32_0 : i32, i32
  }
}

</mosaic_0001>

<llo_original>
// kernel: gcn_forward.5
$region0: #{gcn_forward.5}
  #allocation0 [shape = 'u32[]', space=smem, size = 0x4, offset = 0x4, fixed_abs, tag = 'smem constant byte address 0x4 - core index']
  #allocation1 [shape = 'u32[144,128]{1,0:T(1,128)}', space=vmem, size = 0x12000, scoped, tag = 'internal scratch']
  #allocation2 [shape = 'f32[2,16]{1,0:T(2,128)}', space=vmem, size = 0x400, scoped, tag = 'scratch operand']
  #allocation3 [shape = 'f32[1,1]{1,0:T(1,128)S(1)}', space=vmem, size = 0x200, scoped, tag = 'scoped memory for gcn_forward.5']
  %s0 = inlined_call_operand.vmem [shape: f32[2,256], index: 0, kind: input, shape index: {}]
  %s1 = inlined_call_operand.vmem [shape: f32[256,16], index: 1, kind: input, shape index: {}]
  %s2 = inlined_call_operand.vmem [shape: f32[16,1], index: 2, kind: input, shape index: {}]
  %s3 = inlined_call_operand.<no memory space> [shape: f32[1,1], index: 3, kind: input, shape index: {}]
  %s4 = inlined_call_operand.vmem [shape: f32[2,1], index: 4, kind: output, shape index: {}]
  %s5 = sld [smem:[#allocation0]]
  $region34: #{gcn_forward.5} parent=0
    _
  %s7 = ssub.s32 1, %s5
  %s8 = scalar_select 0, %s7, %s5
  %v9 = vstv %s3
  %10 = vst [vmem:[#allocation3] sm:$0x1] %v9
  // Predicated region
  $region2: #{gcn_forward.5} parent=0 // pred_check
    _
  $region3: #{gcn_forward.5} parent=0 // pred_check_branch
    %12 = sbr.rel (0) target = $region5
  $region4: #{gcn_forward.5} parent=0 // pred_region
    _
  $region5: #{gcn_forward.5} parent=0 // pred_fallthru
    _
  // Predicated region
  $region6: #{gcn_forward.5} parent=0 // pred_check
    _
  $region7: #{gcn_forward.5} parent=0 // pred_check_branch
    %14 = sbr.rel (0) target = $region9
  $region8: #{gcn_forward.5} parent=0 // pred_region
    _
  $region9: #{gcn_forward.5} parent=0 // pred_fallthru
    _
  // Predicated region
  $region10: #{gcn_forward.5} parent=0 // pred_check
    _
  $region11: #{gcn_forward.5} parent=0 // pred_check_branch
    %16 = sbr.rel (0) target = $region13
  $region12: #{gcn_forward.5} parent=0 // pred_region
    _
  $region13: #{gcn_forward.5} parent=0 // pred_fallthru
    _
  // Predicated region
  $region14: #{gcn_forward.5} parent=0 // pred_check
    _
  $region15: #{gcn_forward.5} parent=0 // pred_check_branch
    %18 = sbr.rel (0) target = $region17
  $region16: #{gcn_forward.5} parent=0 // pred_region
    _
  $region17: #{gcn_forward.5} parent=0 // pred_fallthru
    _
  %p19 = scmp.eq.s32.totalorder 0, 0
  // Predicated region
  $region18: #{gcn_forward.5} parent=0 // pred_check
    %p20 = pneg %p19
  $region19: #{gcn_forward.5} parent=0 // pred_check_branch
    %22 = sbr.rel (%p20) target = $region21
  $region20: #{gcn_forward.5} parent=0 // pred_region
    %vm23 = vcmask 123904
    %24 = vst.msk [vmem:[#allocation2] sm:$0x3] %vm23, 0.0
  $region21: #{gcn_forward.5} parent=0 // pred_fallthru
    _
  %v25 = vld [vmem:[#allocation2] sm:$0x3]
  %v26 = vld [vmem:[%s0] sm:$0xf]
  %v27 = vld [vmem:[%s1] sm:$0xff]
  %v28 = vld [vmem:[%s1 + $0x8] sm:$0xff]
  %v29 = vld [vmem:[%s1 + $0x10] sm:$0xff]
  %v30 = vld [vmem:[%s1 + $0x18] sm:$0xff]
  %v31 = vld [vmem:[%s1 + $0x20] sm:$0xff]
  %v32 = vld [vmem:[%s1 + $0x28] sm:$0xff]
  %v33 = vld [vmem:[%s1 + $0x30] sm:$0xff]
  %v34 = vld [vmem:[%s1 + $0x38] sm:$0xff]
  %v35 = vld [vmem:[%s1 + $0x40] sm:$0xff]
  %v36 = vld [vmem:[%s1 + $0x48] sm:$0xff]
  %v37 = vld [vmem:[%s1 + $0x50] sm:$0xff]
  %v38 = vld [vmem:[%s1 + $0x58] sm:$0xff]
  %v39 = vld [vmem:[%s1 + $0x60] sm:$0xff]
  %v40 = vld [vmem:[%s1 + $0x68] sm:$0xff]
  %v41 = vld [vmem:[%s1 + $0x70] sm:$0xff]
  %v42 = vld [vmem:[%s1 + $0x78] sm:$0xff]
  %v43 = vld [vmem:[%s1 + $0x80] sm:$0xff]
  %v44 = vld [vmem:[%s1 + $0x88] sm:$0xff]
  %v45 = vld [vmem:[%s1 + $0x90] sm:$0xff]
  %v46 = vld [vmem:[%s1 + $0x98] sm:$0xff]
  %v47 = vld [vmem:[%s1 + $0xa0] sm:$0xff]
  %v48 = vld [vmem:[%s1 + $0xa8] sm:$0xff]
  %v49 = vld [vmem:[%s1 + $0xb0] sm:$0xff]
  %v50 = vld [vmem:[%s1 + $0xb8] sm:$0xff]
  %v51 = vld [vmem:[%s1 + $0xc0] sm:$0xff]
  %v52 = vld [vmem:[%s1 + $0xc8] sm:$0xff]
  %v53 = vld [vmem:[%s1 + $0xd0] sm:$0xff]
  %v54 = vld [vmem:[%s1 + $0xd8] sm:$0xff]
  %v55 = vld [vmem:[%s1 + $0xe0] sm:$0xff]
  %v56 = vld [vmem:[%s1 + $0xe8] sm:$0xff]
  %v57 = vld [vmem:[%s1 + $0xf0] sm:$0xff]
  %v58 = vld [vmem:[%s1 + $0xf8] sm:$0xff]
  %v61 = vunpack.c.l.s4 1983009808
  %v62 = vunpack.c.0.s8 %v61
  %v63 = vlaneseq
  %v64 = vshrl.u32 %v63, 7
  %v65 = vsub.s32 %v62, %v64
  %v66 = vrot.slane %v26, %v65
  %v67 = vcombine.high %v66, %v66
  %70 = vmatprep.subr.mxu0 0.0
  %71 = vmatpush1.msra.mxu0 %v27
  %72 = vmatprep.subr.mxu0 0.0
  %73 = vmatpush1.msra.mxu0 %v28
  %74 = vmatprep.subr.mxu0 0.0
  %75 = vmatpush1.msra.mxu0 %v29
  %76 = vmatprep.subr.mxu0 0.0
  %77 = vmatpush1.msra.mxu0 %v30
  %78 = vmatprep.subr.mxu0 0.0
  %79 = vmatpush1.msra.mxu0 %v31
  %80 = vmatprep.subr.mxu0 0.0
  %81 = vmatpush1.msra.mxu0 %v32
  %82 = vmatprep.subr.mxu0 0.0
  %83 = vmatpush1.msra.mxu0 %v33
  %84 = vmatprep.subr.mxu0 0.0
  %85 = vmatpush1.msra.mxu0 %v34
  %86 = vmatprep.subr.mxu0 0.0
  %87 = vmatpush1.msra.mxu0 %v35
  %88 = vmatprep.subr.mxu0 0.0
  %89 = vmatpush1.msra.mxu0 %v36
  %90 = vmatprep.subr.mxu0 0.0
  %91 = vmatpush1.msra.mxu0 %v37
  %92 = vmatprep.subr.mxu0 0.0
  %93 = vmatpush1.msra.mxu0 %v38
  %94 = vmatprep.subr.mxu0 0.0
  %95 = vmatpush1.msra.mxu0 %v39
  %96 = vmatprep.subr.mxu0 0.0
  %97 = vmatpush1.msra.mxu0 %v40
  %98 = vmatprep.subr.mxu0 0.0
  %99 = vmatpush1.msra.mxu0 %v41
  %100 = vmatprep.subr.mxu0 0.0
  %101 = vmatpush1.msra.mxu0 %v42
  %102 = vmatprep.subr.mxu0 0.0
  %103 = vmatpush1.msra.mxu0 %v43
  %104 = vmatprep.subr.mxu0 0.0
  %105 = vmatpush1.msra.mxu0 %v44
  %106 = vmatprep.subr.mxu0 0.0
  %107 = vmatpush1.msra.mxu0 %v45
  %108 = vmatprep.subr.mxu0 0.0
  %109 = vmatpush1.msra.mxu0 %v46
  %110 = vmatprep.subr.mxu0 0.0
  %111 = vmatpush1.msra.mxu0 %v47
  %112 = vmatprep.subr.mxu0 0.0
  %113 = vmatpush1.msra.mxu0 %v48
  %114 = vmatprep.subr.mxu0 0.0
  %115 = vmatpush1.msra.mxu0 %v49
  %116 = vmatprep.subr.mxu0 0.0
  %117 = vmatpush1.msra.mxu0 %v50
  %118 = vmatprep.subr.mxu0 0.0
  %119 = vmatpush1.msra.mxu0 %v51
  %120 = vmatprep.subr.mxu0 0.0
  %121 = vmatpush1.msra.mxu0 %v52
  %122 = vmatprep.subr.mxu0 0.0
  %123 = vmatpush1.msra.mxu0 %v53
  %124 = vmatprep.subr.mxu0 0.0
  %125 = vmatpush1.msra.mxu0 %v54
  %126 = vmatprep.subr.mxu0 0.0
  %127 = vmatpush1.msra.mxu0 %v55
  %128 = vmatprep.subr.mxu0 0.0
  %129 = vmatpush1.msra.mxu0 %v56
  %130 = vmatprep.subr.mxu0 0.0
  %131 = vmatpush1.msra.mxu0 %v57
  %132 = vmatprep.subr.mxu0 0.0
  %133 = vmatpush1.msra.mxu0 %v58
  %134 = vmatprep.mubr.f32.mxu0 %v67
  %135 = vmatmul.mubr.f32.gmra.mrb[0].mxu0 %v66
  %v136 = vpop.f32.mrb[0].mxu0
  %v137 = vadd.f32 0.0, %v136
  %v138 = vpop.f32.mrb[0].mxu0
  %139 = vdwg.mxu0
  %v140 = vadd.f32 %v25, %v137
  %vm141 = vcmask 123904
  %142 = vst.msk [vmem:[#allocation2] sm:$0x3] %vm141, %v140
  // Predicated region
  $region22: #{gcn_forward.5} parent=0 // pred_check
    %p143 = pneg %p19
  $region23: #{gcn_forward.5} parent=0 // pred_check_branch
    %145 = sbr.rel (%p143) target = $region25
  $region24: #{gcn_forward.5} parent=0 // pred_region
    %v146 = vld [vmem:[#allocation2] sm:$0x3]
    %v147 = vld [vmem:[%s2] sm:$0xff]
    %v148 = vld [vmem:[%s2 + $0x8] sm:$0xff]
    %v149 = vld [vmem:[#allocation3] sm:$0x1]
    %v151 = vlaneseq
    %v152 = vshrl.u32 %v151, 7
    %v153 = vsub.s32 0, %v152
    %v154 = vrot.slane %v149, %v153
    %vm156 = vcmask 130048
    %v158 = vsel %vm156, %v146, 0
    %160 = vmatprep.subr.mxu0 0.0
    %161 = vmatpush1.msra.mxu0 %v147
    %162 = vmatprep.subr.mxu0 0.0
    %163 = vmatpush1.msra.mxu0 %v148
    %164 = vmatprep.subr.mxu0 0.0
    %165 = vmatpush1.msra.mxu0 0.0
    %166 = vmatprep.subr.mxu0 0.0
    %167 = vmatpush1.msra.mxu0 0.0
    %168 = vmatprep.subr.mxu0 0.0
    %169 = vmatpush1.msra.mxu0 0.0
    %170 = vmatprep.subr.mxu0 0.0
    %171 = vmatpush1.msra.mxu0 0.0
    %172 = vmatprep.subr.mxu0 0.0
    %173 = vmatpush1.msra.mxu0 0.0
    %174 = vmatprep.subr.mxu0 0.0
    %175 = vmatpush1.msra.mxu0 0.0
    %176 = vmatprep.subr.mxu0 0.0
    %177 = vmatpush1.msra.mxu0 0.0
    %178 = vmatprep.subr.mxu0 0.0
    %179 = vmatpush1.msra.mxu0 0.0
    %180 = vmatprep.subr.mxu0 0.0
    %181 = vmatpush1.msra.mxu0 0.0
    %182 = vmatprep.subr.mxu0 0.0
    %183 = vmatpush1.msra.mxu0 0.0
    %184 = vmatprep.subr.mxu0 0.0
    %185 = vmatpush1.msra.mxu0 0.0
    %186 = vmatprep.subr.mxu0 0.0
    %187 = vmatpush1.msra.mxu0 0.0
    %188 = vmatprep.subr.mxu0 0.0
    %189 = vmatpush1.msra.mxu0 0.0
    %190 = vmatprep.subr.mxu0 0.0
    %191 = vmatpush1.msra.mxu0 0.0
    %192 = vmatprep.subr.mxu0 0.0
    %193 = vmatpush1.msra.mxu0 0.0
    %194 = vmatprep.subr.mxu0 0.0
    %195 = vmatpush1.msra.mxu0 0.0
    %196 = vmatprep.subr.mxu0 0.0
    %197 = vmatpush1.msra.mxu0 0.0
    %198 = vmatprep.subr.mxu0 0.0
    %199 = vmatpush1.msra.mxu0 0.0
    %200 = vmatprep.subr.mxu0 0.0
    %201 = vmatpush1.msra.mxu0 0.0
    %202 = vmatprep.subr.mxu0 0.0
    %203 = vmatpush1.msra.mxu0 0.0
    %204 = vmatprep.subr.mxu0 0.0
    %205 = vmatpush1.msra.mxu0 0.0
    %206 = vmatprep.subr.mxu0 0.0
    %207 = vmatpush1.msra.mxu0 0.0
    %208 = vmatprep.subr.mxu0 0.0
    %209 = vmatpush1.msra.mxu0 0.0
    %210 = vmatprep.subr.mxu0 0.0
    %211 = vmatpush1.msra.mxu0 0.0
    %212 = vmatprep.subr.mxu0 0.0
    %213 = vmatpush1.msra.mxu0 0.0
    %214 = vmatprep.subr.mxu0 0.0
    %215 = vmatpush1.msra.mxu0 0.0
    %216 = vmatprep.subr.mxu0 0.0
    %217 = vmatpush1.msra.mxu0 0.0
    %218 = vmatprep.subr.mxu0 0.0
    %219 = vmatpush1.msra.mxu0 0.0
    %220 = vmatprep.subr.mxu0 0.0
    %221 = vmatpush1.msra.mxu0 0.0
    %222 = vmatprep.subr.mxu0 0.0
    %223 = vmatpush1.msra.mxu0 0.0
    %224 = vmatprep.mubr.f32.mxu0 0.0
    %225 = vmatmul.mubr.f32.gmra.mrb[0].mxu0 %v158
    %v226 = vpop.f32.mrb[0].mxu0
    %v227 = vadd.f32 %v154, %v226
    %v228 = vpop.f32.mrb[0].mxu0
    %229 = vdwg.mxu0
    %v230 = vxor.u32 %v227, 2147483648
    %v231 = vmul.f32 %v230, 1.442695
    %v232 = vpow.pop %v231
    %v233 = vadd.f32 %v232, 1.0
    %v234 = vrcp.pop %v233
    %v235 = vmul.f32 1.0, %v234
    %vm236 = vcmask 1024
    %237 = vst.msk [vmem:[%s4] sm:$0x3] %vm236, %v235
  $region25: #{gcn_forward.5} parent=0 // pred_fallthru
    _
  // Predicated region
  $region26: #{gcn_forward.5} parent=0 // pred_check
    _
  $region27: #{gcn_forward.5} parent=0 // pred_check_branch
    %239 = sbr.rel (0) target = $region29
  $region28: #{gcn_forward.5} parent=0 // pred_region
    _
  $region29: #{gcn_forward.5} parent=0 // pred_fallthru
    _
  // Predicated region
  $region30: #{gcn_forward.5} parent=0 // pred_check
    _
  $region31: #{gcn_forward.5} parent=0 // pred_check_branch
    %241 = sbr.rel (0) target = $region33
  $region32: #{gcn_forward.5} parent=0 // pred_region
    _
  $region33: #{gcn_forward.5} parent=0 // pred_fallthru
    _

// kernel: gcn_forward.3
$region0: #{gcn_forward.3}
  #allocation0 [shape = 'u32[]', space=smem, size = 0x4, offset = 0x4, fixed_abs, tag = 'smem constant byte address 0x4 - core index']
  #allocation1 [shape = 'u32[144,128]{1,0:T(1,128)}', space=vmem, size = 0x12000, scoped, tag = 'internal scratch']
  #allocation2 [shape = 'f32[128,16]{1,0:T(8,128)}', space=vmem, size = 0x10000, scoped, tag = 'scratch operand']
  %s0 = inlined_call_operand.vmem [shape: s8[256,256], index: 0, kind: input, shape index: {}]
  %s1 = inlined_call_operand.vmem [shape: f32[256,16], index: 1, kind: input, shape index: {}]
  %s2 = inlined_call_operand.vmem [shape: f32[256,1], index: 2, kind: input, shape index: {}, may-alias: {2,3}]
  %s3 = inlined_call_operand.vmem [shape: f32[256,1], index: 3, kind: input, shape index: {}, may-alias: {2,3}]
  %s4 = inlined_call_operand.vmem [shape: f32[1,16], index: 4, kind: input, shape index: {}]
  %s5 = inlined_call_operand.vmem [shape: f32[256,16], index: 5, kind: output, shape index: {}]
  %s6 = sld [smem:[#allocation0]]
  $region61: #{gcn_forward.3} parent=0
    _
  %s8 = ssub.s32 1, %s6
  %s9 = scalar_select 0, %s8, %s6
  loop: start=0, step=1, limit=4
  $region2: #{gcn_forward.3} parent=0 // loop_pre_header
    _
  $region3: #{gcn_forward.3} parent=0 // loop_header
    %s11 = sphi 0, %s15
    %p12 = scmp.ge.s32.totalorder %s11, 4
    %s18 = sphi 0, %s30
    %s19 = sphi 0, %s26
    %s20 = sphi 0, %s18
    %s21 = sphi 0, %s19
    %s22 = sphi 0, %s20
    %s23 = sphi 0, %s21
    %s35 = sphi 0, %s37
    %s38 = sphi 0, %s35
    %s39 = sphi 0, %s38
    %s55 = sphi 0, %s39
    %s61 = sphi 0, %s63
    %s64 = sphi 0, %s61
    %s65 = sphi 0, %s64
    %s81 = sphi 0, %s65
    %s87 = sphi 0, %s89
    %s90 = sphi 0, %s87
    %s91 = sphi 0, %s90
    %s107 = sphi 0, %s91
    %s113 = sphi 0, %s115
    %s116 = sphi 0, %s113
    %s117 = sphi 0, %s116
    %s133 = sphi 0, %s117
    %s137 = sphi 0, %s137
    %s139 = sphi 0, %s137
    %s140 = sphi 0, %s139
    %s154 = sphi 0, %s140
    %s160 = sphi 0, %s162
    %s163 = sphi 0, %s160
    %s164 = sphi 0, %s163
    %s180 = sphi 0, %s164
  $region4: #{gcn_forward.3} parent=0 // loop_header_branch
    %14 = sbr.rel (%p12) target = $region8
  $region5: #{gcn_forward.3} parent=0 // loop_body
    %s16 = ssub.s32 %s11, 1
    %s17 = ssub.s32 %s11, 2
    %s24 = sadd.s32 1, %s19
    %p25 = scmp.ge.s32.totalorder %s24, 1
    %s26 = scalar_select %p25, 0, %s24
    %s27 = sadd.s32 1, %s18
    %s28 = scalar_select %p25, %s27, %s18
    %p29 = scmp.ge.s32.totalorder %s28, 2
    %s30 = scalar_select %p29, 0, %s28
    %s31 = ssub.s32 %s18, %s30
    %s32 = ssub.s32 %s19, %s26
    %s33 = sor.u32 %s31, %s32
    %p34 = scmp.eq.s32.totalorder %s33, 0
    %s36 = sadd.s32 %s35, 1
    %s37 = scalar_select %p34, %s35, %s36
    %p40 = pneg %p34
    %p41 = scmp.eq.s32.totalorder %s11, 1
    %p42 = por %p40, %p41
    %p43 = scmp.ne.s32.totalorder %s35, %s38
    %p44 = scmp.eq.s32.totalorder %s11, 0
    %p45 = por %p43, %p44
    %p46 = scmp.ne.s32.totalorder %s35, %s38
    %p47 = scmp.eq.s32.totalorder %s16, 1
    %p48 = por %p46, %p47
    %p49 = scmp.ne.s32.totalorder %s38, %s39
    %p50 = scmp.eq.s32.totalorder %s16, 0
    %p51 = por %p49, %p50
    %p52 = scmp.ne.s32.totalorder %s38, %s39
    %p53 = scmp.eq.s32.totalorder %s17, 1
    %p54 = por %p52, %p53
    %p56 = scmp.ne.s32.totalorder %s39, %s55
    %p57 = scmp.eq.s32.totalorder %s17, 0
    %p58 = por %p56, %p57
    %s59 = ssub.s32 %s19, %s26
    %p60 = scmp.eq.s32.totalorder %s59, 0
    %s62 = sadd.s32 %s61, 1
    %s63 = scalar_select %p60, %s61, %s62
    %p66 = pneg %p60
    %p67 = scmp.eq.s32.totalorder %s11, 1
    %p68 = por %p66, %p67
    %p69 = scmp.ne.s32.totalorder %s61, %s64
    %p70 = scmp.eq.s32.totalorder %s11, 0
    %p71 = por %p69, %p70
    %p72 = scmp.ne.s32.totalorder %s61, %s64
    %p73 = scmp.eq.s32.totalorder %s16, 1
    %p74 = por %p72, %p73
    %p75 = scmp.ne.s32.totalorder %s64, %s65
    %p76 = scmp.eq.s32.totalorder %s16, 0
    %p77 = por %p75, %p76
    %p78 = scmp.ne.s32.totalorder %s64, %s65
    %p79 = scmp.eq.s32.totalorder %s17, 1
    %p80 = por %p78, %p79
    %p82 = scmp.ne.s32.totalorder %s65, %s81
    %p83 = scmp.eq.s32.totalorder %s17, 0
    %p84 = por %p82, %p83
    %s85 = ssub.s32 %s19, %s26
    %p86 = scmp.eq.s32.totalorder %s85, 0
    %s88 = sadd.s32 %s87, 1
    %s89 = scalar_select %p86, %s87, %s88
    %p92 = pneg %p86
    %p93 = scmp.eq.s32.totalorder %s11, 1
    %p94 = por %p92, %p93
    %p95 = scmp.ne.s32.totalorder %s87, %s90
    %p96 = scmp.eq.s32.totalorder %s11, 0
    %p97 = por %p95, %p96
    %p98 = scmp.ne.s32.totalorder %s87, %s90
    %p99 = scmp.eq.s32.totalorder %s16, 1
    %p100 = por %p98, %p99
    %p101 = scmp.ne.s32.totalorder %s90, %s91
    %p102 = scmp.eq.s32.totalorder %s16, 0
    %p103 = por %p101, %p102
    %p104 = scmp.ne.s32.totalorder %s90, %s91
    %p105 = scmp.eq.s32.totalorder %s17, 1
    %p106 = por %p104, %p105
    %p108 = scmp.ne.s32.totalorder %s91, %s107
    %p109 = scmp.eq.s32.totalorder %s17, 0
    %p110 = por %p108, %p109
    %s111 = ssub.s32 %s18, %s30
    %p112 = scmp.eq.s32.totalorder %s111, 0
    %s114 = sadd.s32 %s113, 1
    %s115 = scalar_select %p112, %s113, %s114
    %p118 = pneg %p112
    %p119 = scmp.eq.s32.totalorder %s11, 1
    %p120 = por %p118, %p119
    %p121 = scmp.ne.s32.totalorder %s113, %s116
    %p122 = scmp.eq.s32.totalorder %s11, 0
    %p123 = por %p121, %p122
    %p124 = scmp.ne.s32.totalorder %s113, %s116
    %p125 = scmp.eq.s32.totalorder %s16, 1
    %p126 = por %p124, %p125
    %p127 = scmp.ne.s32.totalorder %s116, %s117
    %p128 = scmp.eq.s32.totalorder %s16, 0
    %p129 = por %p127, %p128
    %p130 = scmp.ne.s32.totalorder %s116, %s117
    %p131 = scmp.eq.s32.totalorder %s17, 1
    %p132 = por %p130, %p131
    %p134 = scmp.ne.s32.totalorder %s117, %s133
    %p135 = scmp.eq.s32.totalorder %s17, 0
    %p136 = por %p134, %p135
    %s138 = sadd.s32 %s137, 1
    %p141 = scmp.eq.s32.totalorder %s11, 1
    %p142 = scmp.ne.s32.totalorder %s137, %s139
    %p143 = scmp.eq.s32.totalorder %s11, 0
    %p144 = por %p142, %p143
    %p145 = scmp.ne.s32.totalorder %s137, %s139
    %p146 = scmp.eq.s32.totalorder %s16, 1
    %p147 = por %p145, %p146
    %p148 = scmp.ne.s32.totalorder %s139, %s140
    %p149 = scmp.eq.s32.totalorder %s16, 0
    %p150 = por %p148, %p149
    %p151 = scmp.ne.s32.totalorder %s139, %s140
    %p152 = scmp.eq.s32.totalorder %s17, 1
    %p153 = por %p151, %p152
    %p155 = scmp.ne.s32.totalorder %s140, %s154
    %p156 = scmp.eq.s32.totalorder %s17, 0
    %p157 = por %p155, %p156
    %s158 = ssub.s32 %s18, %s30
    %p159 = scmp.eq.s32.totalorder %s158, 0
    %s161 = sadd.s32 %s160, 1
    %s162 = scalar_select %p159, %s160, %s161
    %p165 = pneg %p159
    %p166 = scmp.eq.s32.totalorder %s11, 1
    %p167 = por %p165, %p166
    %p168 = scmp.ne.s32.totalorder %s160, %s163
    %p169 = scmp.eq.s32.totalorder %s11, 0
    %p170 = por %p168, %p169
    %p171 = scmp.ne.s32.totalorder %s160, %s163
    %p172 = scmp.eq.s32.totalorder %s16, 1
    %p173 = por %p171, %p172
    %p174 = scmp.ne.s32.totalorder %s163, %s164
    %p175 = scmp.eq.s32.totalorder %s16, 0
    %p176 = por %p174, %p175
    %p177 = scmp.ne.s32.totalorder %s163, %s164
    %p178 = scmp.eq.s32.totalorder %s17, 1
    %p179 = por %p177, %p178
    %p181 = scmp.ne.s32.totalorder %s164, %s180
    %p182 = scmp.eq.s32.totalorder %s17, 0
    %p183 = por %p181, %p182
    %p184 = scmp.le.s32.totalorder 1, %s11
    %p185 = scmp.lt.s32.totalorder %s11, 3
    %p186 = pnand %p184, %p185
    %p187 = pneg %p186
    // Predicated region
    $region9: #{gcn_forward.3} parent=5 // pred_check
      _
    $region10: #{gcn_forward.3} parent=5 // pred_check_branch
      %189 = sbr.rel (%p186) target = $region12
    $region11: #{gcn_forward.3} parent=5 // pred_region
      %s190 = ssub.s32 %s11, 1
      // Predicated region
      $region13: #{gcn_forward.3} parent=11 // pred_check
        %p191 = pneg %p77
      $region14: #{gcn_forward.3} parent=11 // pred_check_branch
        %193 = sbr.rel (%p191) target = $region16
      $region15: #{gcn_forward.3} parent=11 // pred_region
        %s194 = smul.u32 32, %s21
        %p195 = scmp.lt.s32.totalorder %s194, 31
        %s196 = scalar_select %p195, %s194, 31
        %s197 = smul.addr %s196, 8
        %s198 = scalar_lea.vmem %s1, %s197
        %s199 = smul.u32 32, %s21
      $region16: #{gcn_forward.3} parent=11 // pred_fallthru
        _
      // Predicated region
      $region17: #{gcn_forward.3} parent=11 // pred_check
        %p200 = pneg %p103
      $region18: #{gcn_forward.3} parent=11 // pred_check_branch
        %202 = sbr.rel (%p200) target = $region20
      $region19: #{gcn_forward.3} parent=11 // pred_region
        %s203 = smul.u32 32, %s21
        %p204 = scmp.lt.s32.totalorder %s203, 31
        %s205 = scalar_select %p204, %s203, 31
        %s206 = smul.addr %s205, 8
        %s207 = scalar_lea.vmem %s2, %s206
        %s208 = smul.u32 32, %s21
      $region20: #{gcn_forward.3} parent=11 // pred_fallthru
        _
      // Predicated region
      $region21: #{gcn_forward.3} parent=11 // pred_check
        %p209 = pneg %p150
      $region22: #{gcn_forward.3} parent=11 // pred_check_branch
        %211 = sbr.rel (%p209) target = $region24
      $region23: #{gcn_forward.3} parent=11 // pred_region
        _
      $region24: #{gcn_forward.3} parent=11 // pred_fallthru
        _
    $region12: #{gcn_forward.3} parent=5 // pred_fallthru
      _
    %p212 = scmp.lt.s32.totalorder %s11, 2
    // Predicated region
    $region25: #{gcn_forward.3} parent=5 // pred_check
      %p213 = pneg %p212
    $region26: #{gcn_forward.3} parent=5 // pred_check_branch
      %215 = sbr.rel (%p213) target = $region28
    $region27: #{gcn_forward.3} parent=5 // pred_region
      // Predicated region
      $region29: #{gcn_forward.3} parent=27 // pred_check
        %p216 = pneg %p45
      $region30: #{gcn_forward.3} parent=27 // pred_check_branch
        %218 = sbr.rel (%p216) target = $region32
      $region31: #{gcn_forward.3} parent=27 // pred_region
        %s219 = smul.u32 16, %s18
        %s220 = smul.u32 2, %s19
        %p221 = scmp.lt.s32.totalorder %s219, 31
        %s222 = scalar_select %p221, %s219, 31
        %p223 = scmp.lt.s32.totalorder %s220, 1
        %s224 = scalar_select %p223, %s220, 1
        %s225 = smul.addr %s222, 2
        %s226 = sadd.s32 %s224, %s225
        %s227 = smul.addr %s226, 2
        %s228 = scalar_lea.vmem %s0, %s227
        %s229 = smul.u32 16, %s18
        %s230 = smul.u32 2, %s19
      $region32: #{gcn_forward.3} parent=27 // pred_fallthru
        _
      // Predicated region
      $region33: #{gcn_forward.3} parent=27 // pred_check
        %p231 = pneg %p123
      $region34: #{gcn_forward.3} parent=27 // pred_check_branch
        %233 = sbr.rel (%p231) target = $region36
      $region35: #{gcn_forward.3} parent=27 // pred_region
        %s234 = smul.u32 16, %s18
        %p235 = scmp.lt.s32.totalorder %s234, 31
        %s236 = scalar_select %p235, %s234, 31
        %s237 = smul.addr %s236, 8
        %s238 = scalar_lea.vmem %s3, %s237
        %s239 = smul.u32 16, %s18
      $region36: #{gcn_forward.3} parent=27 // pred_fallthru
        _
    $region28: #{gcn_forward.3} parent=5 // pred_fallthru
      _
    %p240 = scmp.le.s32.totalorder 1, %s11
    %p241 = scmp.lt.s32.totalorder %s11, 3
    %p242 = pnand %p240, %p241
    %p243 = pneg %p242
    // Predicated region
    $region37: #{gcn_forward.3} parent=5 // pred_check
      _
    $region38: #{gcn_forward.3} parent=5 // pred_check_branch
      %245 = sbr.rel (%p242) target = $region40
    $region39: #{gcn_forward.3} parent=5 // pred_region
      %s246 = ssub.s32 %s11, 1
      %s247 = smul.u32 16, %s20
      %s248 = smul.u32 2, %s21
      %p249 = scmp.lt.s32.totalorder %s247, 31
      %s250 = scalar_select %p249, %s247, 31
      %p251 = scmp.lt.s32.totalorder %s248, 1
      %s252 = scalar_select %p251, %s248, 1
      %s253 = smul.addr %s250, 2
      %s254 = sadd.s32 %s252, %s253
      %s255 = smul.addr %s254, 2
      %s256 = scalar_lea.vmem %s0, %s255
      %p257 = pneg %p51
      %p258 = pneg %p48
      %s259 = smul.u32 32, %s21
      %p260 = scmp.lt.s32.totalorder %s259, 31
      %s261 = scalar_select %p260, %s259, 31
      %s262 = smul.addr %s261, 8
      %s263 = scalar_lea.vmem %s1, %s262
      %p264 = pneg %p77
      %p265 = pneg %p74
      %s266 = smul.u32 32, %s21
      %p267 = scmp.lt.s32.totalorder %s266, 31
      %s268 = scalar_select %p267, %s266, 31
      %s269 = smul.addr %s268, 8
      %s270 = scalar_lea.vmem %s2, %s269
      %p271 = pneg %p103
      %p272 = pneg %p100
      %s273 = smul.u32 16, %s20
      %p274 = scmp.lt.s32.totalorder %s273, 31
      %s275 = scalar_select %p274, %s273, 31
      %s276 = smul.addr %s275, 8
      %s277 = scalar_lea.vmem %s3, %s276
      %p278 = pneg %p129
      %p279 = pneg %p126
      %p280 = pneg %p150
      %p281 = pneg %p147
      %p282 = pneg %p176
      %p283 = pneg %p173
      %s284 = smul.u32 16, %s20
      %p285 = scmp.lt.s32.totalorder %s284, 31
      %s286 = scalar_select %p285, %s284, 31
      %s287 = smul.addr %s286, 8
      %s288 = scalar_lea.vmem %s5, %s287
      %s289 = smul.u32 16, %s20
      %s290 = smul.u32 2, %s21
      %p291 = scmp.lt.s32.totalorder %s289, 31
      %s292 = scalar_select %p291, %s289, 31
      %p293 = scmp.lt.s32.totalorder %s290, 1
      %s294 = scalar_select %p293, %s290, 1
      %s295 = smul.addr %s292, 2
      %s296 = sadd.s32 %s294, %s295
      %s297 = smul.addr %s296, 2
      %s298 = scalar_lea.vmem %s0, %s297
      %s299 = smul.u32 16, %s20
      %s300 = smul.u32 2, %s21
      %s301 = smul.u32 32, %s21
      %p302 = scmp.lt.s32.totalorder %s301, 31
      %s303 = scalar_select %p302, %s301, 31
      %s304 = smul.addr %s303, 8
      %s305 = scalar_lea.vmem %s1, %s304
      %s306 = smul.u32 32, %s21
      %s307 = smul.u32 32, %s21
      %p308 = scmp.lt.s32.totalorder %s307, 31
      %s309 = scalar_select %p308, %s307, 31
      %s310 = smul.addr %s309, 8
      %s311 = scalar_lea.vmem %s2, %s310
      %s312 = smul.u32 32, %s21
      %s313 = smul.u32 16, %s20
      %p314 = scmp.lt.s32.totalorder %s313, 31
      %s315 = scalar_select %p314, %s313, 31
      %s316 = smul.addr %s315, 8
      %s317 = scalar_lea.vmem %s3, %s316
      %s318 = smul.u32 16, %s20
      %s319 = smul.u32 16, %s20
      %p320 = scmp.lt.s32.totalorder %s319, 31
      %s321 = scalar_select %p320, %s319, 31
      %s322 = smul.addr %s321, 8
      %s323 = scalar_lea.vmem %s5, %s322
      %s324 = smul.u32 16, %s20
      %p326 = scmp.eq.s32.totalorder %s21, 0
      // Predicated region
      $region41: #{gcn_forward.3} parent=39 // pred_check
        %p327 = pneg %p326
      $region42: #{gcn_forward.3} parent=39 // pred_check_branch
        %329 = sbr.rel (%p327) target = $region44
      $region43: #{gcn_forward.3} parent=39 // pred_region
        %vm330 = vcmask 130048
        %331 = vst.msk [vmem:[#allocation2] sm:$0xff] %vm330, 0.0
        %332 = vst.msk [vmem:[#allocation2 + $0x8] sm:$0xff] %vm330, 0.0
        %333 = vst.msk [vmem:[#allocation2 + $0x10] sm:$0xff] %vm330, 0.0
        %334 = vst.msk [vmem:[#allocation2 + $0x18] sm:$0xff] %vm330, 0.0
        %335 = vst.msk [vmem:[#allocation2 + $0x20] sm:$0xff] %vm330, 0.0
        %336 = vst.msk [vmem:[#allocation2 + $0x28] sm:$0xff] %vm330, 0.0
        %337 = vst.msk [vmem:[#allocation2 + $0x30] sm:$0xff] %vm330, 0.0
        %338 = vst.msk [vmem:[#allocation2 + $0x38] sm:$0xff] %vm330, 0.0
        %339 = vst.msk [vmem:[#allocation2 + $0x40] sm:$0xff] %vm330, 0.0
        %340 = vst.msk [vmem:[#allocation2 + $0x48] sm:$0xff] %vm330, 0.0
        %341 = vst.msk [vmem:[#allocation2 + $0x50] sm:$0xff] %vm330, 0.0
        %342 = vst.msk [vmem:[#allocation2 + $0x58] sm:$0xff] %vm330, 0.0
        %343 = vst.msk [vmem:[#allocation2 + $0x60] sm:$0xff] %vm330, 0.0
        %344 = vst.msk [vmem:[#allocation2 + $0x68] sm:$0xff] %vm330, 0.0
        %345 = vst.msk [vmem:[#allocation2 + $0x70] sm:$0xff] %vm330, 0.0
        %346 = vst.msk [vmem:[#allocation2 + $0x78] sm:$0xff] %vm330, 0.0
      $region44: #{gcn_forward.3} parent=39 // pred_fallthru
        _
      %v347 = vld [vmem:[%s298] sm:$0xf]
      %v348 = vld [vmem:[%s298 + $0x4] sm:$0xf]
      %v349 = vld [vmem:[%s298 + $0x8] sm:$0xf]
      %v350 = vld [vmem:[%s298 + $0xc] sm:$0xf]
      %v351 = vld [vmem:[%s298 + $0x10] sm:$0xf]
      %v352 = vld [vmem:[%s298 + $0x14] sm:$0xf]
      %v353 = vld [vmem:[%s298 + $0x18] sm:$0xf]
      %v354 = vld [vmem:[%s298 + $0x1c] sm:$0xf]
      %v355 = vld [vmem:[%s298 + $0x20] sm:$0xf]
      %v356 = vld [vmem:[%s298 + $0x24] sm:$0xf]
      %v357 = vld [vmem:[%s298 + $0x28] sm:$0xf]
      %v358 = vld [vmem:[%s298 + $0x2c] sm:$0xf]
      %v359 = vld [vmem:[%s298 + $0x30] sm:$0xf]
      %v360 = vld [vmem:[%s298 + $0x34] sm:$0xf]
      %v361 = vld [vmem:[%s298 + $0x38] sm:$0xf]
      %v362 = vld [vmem:[%s298 + $0x3c] sm:$0xf]
      %v363 = vunpack.c.l.s8.bf16 %v347
      %v364 = vunpack.c.l.s8.bf16 %v348
      %v365 = vunpack.c.l.s8.bf16 %v349
      %v366 = vunpack.c.l.s8.bf16 %v350
      %v367 = vunpack.c.l.s8.bf16 %v351
      %v368 = vunpack.c.l.s8.bf16 %v352
      %v369 = vunpack.c.l.s8.bf16 %v353
      %v370 = vunpack.c.l.s8.bf16 %v354
      %v371 = vunpack.c.l.s8.bf16 %v355
      %v372 = vunpack.c.l.s8.bf16 %v356
      %v373 = vunpack.c.l.s8.bf16 %v357
      %v374 = vunpack.c.l.s8.bf16 %v358
      %v375 = vunpack.c.l.s8.bf16 %v359
      %v376 = vunpack.c.l.s8.bf16 %v360
      %v377 = vunpack.c.l.s8.bf16 %v361
      %v378 = vunpack.c.l.s8.bf16 %v362
      %v379 = vld [vmem:[%s305] sm:$0xff]
      %v380 = vld [vmem:[%s305 + $0x8] sm:$0xff]
      %v381 = vld [vmem:[%s305 + $0x10] sm:$0xff]
      %v382 = vld [vmem:[%s305 + $0x18] sm:$0xff]
      %v383 = vld [vmem:[%s305 + $0x20] sm:$0xff]
      %v384 = vld [vmem:[%s305 + $0x28] sm:$0xff]
      %v385 = vld [vmem:[%s305 + $0x30] sm:$0xff]
      %v386 = vld [vmem:[%s305 + $0x38] sm:$0xff]
      %v387 = vld [vmem:[%s305 + $0x40] sm:$0xff]
      %v388 = vld [vmem:[%s305 + $0x48] sm:$0xff]
      %v389 = vld [vmem:[%s305 + $0x50] sm:$0xff]
      %v390 = vld [vmem:[%s305 + $0x58] sm:$0xff]
      %v391 = vld [vmem:[%s305 + $0x60] sm:$0xff]
      %v392 = vld [vmem:[%s305 + $0x68] sm:$0xff]
      %v393 = vld [vmem:[%s305 + $0x70] sm:$0xff]
      %v394 = vld [vmem:[%s305 + $0x78] sm:$0xff]
      %v395 = vld [vmem:[%s305 + $0x80] sm:$0xff]
      %v396 = vld [vmem:[%s305 + $0x88] sm:$0xff]
      %v397 = vld [vmem:[%s305 + $0x90] sm:$0xff]
      %v398 = vld [vmem:[%s305 + $0x98] sm:$0xff]
      %v399 = vld [vmem:[%s305 + $0xa0] sm:$0xff]
      %v400 = vld [vmem:[%s305 + $0xa8] sm:$0xff]
      %v401 = vld [vmem:[%s305 + $0xb0] sm:$0xff]
      %v402 = vld [vmem:[%s305 + $0xb8] sm:$0xff]
      %v403 = vld [vmem:[%s305 + $0xc0] sm:$0xff]
      %v404 = vld [vmem:[%s305 + $0xc8] sm:$0xff]
      %v405 = vld [vmem:[%s305 + $0xd0] sm:$0xff]
      %v406 = vld [vmem:[%s305 + $0xd8] sm:$0xff]
      %v407 = vld [vmem:[%s305 + $0xe0] sm:$0xff]
      %v408 = vld [vmem:[%s305 + $0xe8] sm:$0xff]
      %v409 = vld [vmem:[%s305 + $0xf0] sm:$0xff]
      %v410 = vld [vmem:[%s305 + $0xf8] sm:$0xff]
      %v411 = vld [vmem:[%s311] sm:$0xff]
      %v412 = vld [vmem:[%s311 + $0x8] sm:$0xff]
      %v413 = vld [vmem:[%s311 + $0x10] sm:$0xff]
      %v414 = vld [vmem:[%s311 + $0x18] sm:$0xff]
      %v415 = vld [vmem:[%s311 + $0x20] sm:$0xff]
      %v416 = vld [vmem:[%s311 + $0x28] sm:$0xff]
      %v417 = vld [vmem:[%s311 + $0x30] sm:$0xff]
      %v418 = vld [vmem:[%s311 + $0x38] sm:$0xff]
      %v419 = vld [vmem:[%s311 + $0x40] sm:$0xff]
      %v420 = vld [vmem:[%s311 + $0x48] sm:$0xff]
      %v421 = vld [vmem:[%s311 + $0x50] sm:$0xff]
      %v422 = vld [vmem:[%s311 + $0x58] sm:$0xff]
      %v423 = vld [vmem:[%s311 + $0x60] sm:$0xff]
      %v424 = vld [vmem:[%s311 + $0x68] sm:$0xff]
      %v425 = vld [vmem:[%s311 + $0x70] sm:$0xff]
      %v426 = vld [vmem:[%s311 + $0x78] sm:$0xff]
      %v427 = vld [vmem:[%s311 + $0x80] sm:$0xff]
      %v428 = vld [vmem:[%s311 + $0x88] sm:$0xff]
      %v429 = vld [vmem:[%s311 + $0x90] sm:$0xff]
      %v430 = vld [vmem:[%s311 + $0x98] sm:$0xff]
      %v431 = vld [vmem:[%s311 + $0xa0] sm:$0xff]
      %v432 = vld [vmem:[%s311 + $0xa8] sm:$0xff]
      %v433 = vld [vmem:[%s311 + $0xb0] sm:$0xff]
      %v434 = vld [vmem:[%s311 + $0xb8] sm:$0xff]
      %v435 = vld [vmem:[%s311 + $0xc0] sm:$0xff]
      %v436 = vld [vmem:[%s311 + $0xc8] sm:$0xff]
      %v437 = vld [vmem:[%s311 + $0xd0] sm:$0xff]
      %v438 = vld [vmem:[%s311 + $0xd8] sm:$0xff]
      %v439 = vld [vmem:[%s311 + $0xe0] sm:$0xff]
      %v440 = vld [vmem:[%s311 + $0xe8] sm:$0xff]
      %v441 = vld [vmem:[%s311 + $0xf0] sm:$0xff]
      %v442 = vld [vmem:[%s311 + $0xf8] sm:$0xff]
      %444 = vset.pattern.permute.xlu0 0
      %445 = vperm.xlu0 %444, %v411
      %v446 = vpop.permute.xlu0 %445
      %449 = vset.pattern.permute.xlu0 0
      %450 = vperm.xlu0 %449, %v412
      %v451 = vpop.permute.xlu0 %450
      %454 = vset.pattern.permute.xlu0 0
      %455 = vperm.xlu0 %454, %v413
      %v456 = vpop.permute.xlu0 %455
      %459 = vset.pattern.permute.xlu0 0
      %460 = vperm.xlu0 %459, %v414
      %v461 = vpop.permute.xlu0 %460
      %464 = vset.pattern.permute.xlu0 0
      %465 = vperm.xlu0 %464, %v415
      %v466 = vpop.permute.xlu0 %465
      %469 = vset.pattern.permute.xlu0 0
      %470 = vperm.xlu0 %469, %v416
      %v471 = vpop.permute.xlu0 %470
      %474 = vset.pattern.permute.xlu0 0
      %475 = vperm.xlu0 %474, %v417
      %v476 = vpop.permute.xlu0 %475
      %479 = vset.pattern.permute.xlu0 0
      %480 = vperm.xlu0 %479, %v418
      %v481 = vpop.permute.xlu0 %480
      %484 = vset.pattern.permute.xlu0 0
      %485 = vperm.xlu0 %484, %v419
      %v486 = vpop.permute.xlu0 %485
      %489 = vset.pattern.permute.xlu0 0
      %490 = vperm.xlu0 %489, %v420
      %v491 = vpop.permute.xlu0 %490
      %494 = vset.pattern.permute.xlu0 0
      %495 = vperm.xlu0 %494, %v421
      %v496 = vpop.permute.xlu0 %495
      %499 = vset.pattern.permute.xlu0 0
      %500 = vperm.xlu0 %499, %v422
      %v501 = vpop.permute.xlu0 %500
      %504 = vset.pattern.permute.xlu0 0
      %505 = vperm.xlu0 %504, %v423
      %v506 = vpop.permute.xlu0 %505
      %509 = vset.pattern.permute.xlu0 0
      %510 = vperm.xlu0 %509, %v424
      %v511 = vpop.permute.xlu0 %510
      %514 = vset.pattern.permute.xlu0 0
      %515 = vperm.xlu0 %514, %v425
      %v516 = vpop.permute.xlu0 %515
      %519 = vset.pattern.permute.xlu0 0
      %520 = vperm.xlu0 %519, %v426
      %v521 = vpop.permute.xlu0 %520
      %524 = vset.pattern.permute.xlu0 0
      %525 = vperm.xlu0 %524, %v427
      %v526 = vpop.permute.xlu0 %525
      %529 = vset.pattern.permute.xlu0 0
      %530 = vperm.xlu0 %529, %v428
      %v531 = vpop.permute.xlu0 %530
      %534 = vset.pattern.permute.xlu0 0
      %535 = vperm.xlu0 %534, %v429
      %v536 = vpop.permute.xlu0 %535
      %539 = vset.pattern.permute.xlu0 0
      %540 = vperm.xlu0 %539, %v430
      %v541 = vpop.permute.xlu0 %540
      %544 = vset.pattern.permute.xlu0 0
      %545 = vperm.xlu0 %544, %v431
      %v546 = vpop.permute.xlu0 %545
      %549 = vset.pattern.permute.xlu0 0
      %550 = vperm.xlu0 %549, %v432
      %v551 = vpop.permute.xlu0 %550
      %554 = vset.pattern.permute.xlu0 0
      %555 = vperm.xlu0 %554, %v433
      %v556 = vpop.permute.xlu0 %555
      %559 = vset.pattern.permute.xlu0 0
      %560 = vperm.xlu0 %559, %v434
      %v561 = vpop.permute.xlu0 %560
      %564 = vset.pattern.permute.xlu0 0
      %565 = vperm.xlu0 %564, %v435
      %v566 = vpop.permute.xlu0 %565
      %569 = vset.pattern.permute.xlu0 0
      %570 = vperm.xlu0 %569, %v436
      %v571 = vpop.permute.xlu0 %570
      %574 = vset.pattern.permute.xlu0 0
      %575 = vperm.xlu0 %574, %v437
      %v576 = vpop.permute.xlu0 %575
      %579 = vset.pattern.permute.xlu0 0
      %580 = vperm.xlu0 %579, %v438
      %v581 = vpop.permute.xlu0 %580
      %584 = vset.pattern.permute.xlu0 0
      %585 = vperm.xlu0 %584, %v439
      %v586 = vpop.permute.xlu0 %585
      %589 = vset.pattern.permute.xlu0 0
      %590 = vperm.xlu0 %589, %v440
      %v591 = vpop.permute.xlu0 %590
      %594 = vset.pattern.permute.xlu0 0
      %595 = vperm.xlu0 %594, %v441
      %v596 = vpop.permute.xlu0 %595
      %599 = vset.pattern.permute.xlu0 0
      %600 = vperm.xlu0 %599, %v442
      %v601 = vpop.permute.xlu0 %600
      %v603 = vmul.f32 %v379, %v446
      %v604 = vmul.f32 %v380, %v451
      %v605 = vmul.f32 %v381, %v456
      %v606 = vmul.f32 %v382, %v461
      %v607 = vmul.f32 %v383, %v466
      %v608 = vmul.f32 %v384, %v471
      %v609 = vmul.f32 %v385, %v476
      %v610 = vmul.f32 %v386, %v481
      %v611 = vmul.f32 %v387, %v486
      %v612 = vmul.f32 %v388, %v491
      %v613 = vmul.f32 %v389, %v496
      %v614 = vmul.f32 %v390, %v501
      %v615 = vmul.f32 %v391, %v506
      %v616 = vmul.f32 %v392, %v511
      %v617 = vmul.f32 %v393, %v516
      %v618 = vmul.f32 %v394, %v521
      %v619 = vmul.f32 %v395, %v526
      %v620 = vmul.f32 %v396, %v531
      %v621 = vmul.f32 %v397, %v536
      %v622 = vmul.f32 %v398, %v541
      %v623 = vmul.f32 %v399, %v546
      %v624 = vmul.f32 %v400, %v551
      %v625 = vmul.f32 %v401, %v556
      %v626 = vmul.f32 %v402, %v561
      %v627 = vmul.f32 %v403, %v566
      %v628 = vmul.f32 %v404, %v571
      %v629 = vmul.f32 %v405, %v576
      %v630 = vmul.f32 %v406, %v581
      %v631 = vmul.f32 %v407, %v586
      %v632 = vmul.f32 %v408, %v591
      %v633 = vmul.f32 %v409, %v596
      %v634 = vmul.f32 %v410, %v601
      %v635 = vpack.c.bf16 %v604, %v603
      %v636 = vpack.c.bf16 %v606, %v605
      %v637 = vpack.c.bf16 %v608, %v607
      %v638 = vpack.c.bf16 %v610, %v609
      %v639 = vpack.c.bf16 %v612, %v611
      %v640 = vpack.c.bf16 %v614, %v613
      %v641 = vpack.c.bf16 %v616, %v615
      %v642 = vpack.c.bf16 %v618, %v617
      %v643 = vpack.c.bf16 %v620, %v619
      %v644 = vpack.c.bf16 %v622, %v621
      %v645 = vpack.c.bf16 %v624, %v623
      %v646 = vpack.c.bf16 %v626, %v625
      %v647 = vpack.c.bf16 %v628, %v627
      %v648 = vpack.c.bf16 %v630, %v629
      %v649 = vpack.c.bf16 %v632, %v631
      %v650 = vpack.c.bf16 %v634, %v633
      %v651 = vld [vmem:[#allocation2] sm:$0xff]
      %v652 = vld [vmem:[#allocation2 + $0x8] sm:$0xff]
      %v653 = vld [vmem:[#allocation2 + $0x10] sm:$0xff]
      %v654 = vld [vmem:[#allocation2 + $0x18] sm:$0xff]
      %v655 = vld [vmem:[#allocation2 + $0x20] sm:$0xff]
      %v656 = vld [vmem:[#allocation2 + $0x28] sm:$0xff]
      %v657 = vld [vmem:[#allocation2 + $0x30] sm:$0xff]
      %v658 = vld [vmem:[#allocation2 + $0x38] sm:$0xff]
      %v659 = vld [vmem:[#allocation2 + $0x40] sm:$0xff]
      %v660 = vld [vmem:[#allocation2 + $0x48] sm:$0xff]
      %v661 = vld [vmem:[#allocation2 + $0x50] sm:$0xff]
      %v662 = vld [vmem:[#allocation2 + $0x58] sm:$0xff]
      %v663 = vld [vmem:[#allocation2 + $0x60] sm:$0xff]
      %v664 = vld [vmem:[#allocation2 + $0x68] sm:$0xff]
      %v665 = vld [vmem:[#allocation2 + $0x70] sm:$0xff]
      %v666 = vld [vmem:[#allocation2 + $0x78] sm:$0xff]
      %v683 = vunpack.c.l.b16 %v363
      %v684 = vunpack.c.h.b16 %v363
      %v685 = vunpack.c.l.b16 %v364
      %v686 = vunpack.c.h.b16 %v364
      %v687 = vunpack.c.l.b16 %v365
      %v688 = vunpack.c.h.b16 %v365
      %v689 = vunpack.c.l.b16 %v366
      %v690 = vunpack.c.h.b16 %v366
      %v691 = vunpack.c.l.b16 %v367
      %v692 = vunpack.c.h.b16 %v367
      %v693 = vunpack.c.l.b16 %v368
      %v694 = vunpack.c.h.b16 %v368
      %v695 = vunpack.c.l.b16 %v369
      %v696 = vunpack.c.h.b16 %v369
      %v697 = vunpack.c.l.b16 %v370
      %v698 = vunpack.c.h.b16 %v370
      %v699 = vunpack.c.l.b16 %v371
      %v700 = vunpack.c.h.b16 %v371
      %v701 = vunpack.c.l.b16 %v372
      %v702 = vunpack.c.h.b16 %v372
      %v703 = vunpack.c.l.b16 %v373
      %v704 = vunpack.c.h.b16 %v373
      %v705 = vunpack.c.l.b16 %v374
      %v706 = vunpack.c.h.b16 %v374
      %v707 = vunpack.c.l.b16 %v375
      %v708 = vunpack.c.h.b16 %v375
      %v709 = vunpack.c.l.b16 %v376
      %v710 = vunpack.c.h.b16 %v376
      %v711 = vunpack.c.l.b16 %v377
      %v712 = vunpack.c.h.b16 %v377
      %v713 = vunpack.c.l.b16 %v378
      %v714 = vunpack.c.h.b16 %v378
      %v715 = vpack.c.b16 %v685, %v683
      %v716 = vpack.c.b16 %v686, %v684
      %v717 = vpack.c.b16 %v689, %v687
      %v718 = vpack.c.b16 %v690, %v688
      %v719 = vpack.c.b16 %v693, %v691
      %v720 = vpack.c.b16 %v694, %v692
      %v721 = vpack.c.b16 %v697, %v695
      %v722 = vpack.c.b16 %v698, %v696
      %v723 = vpack.c.b16 %v701, %v699
      %v724 = vpack.c.b16 %v702, %v700
      %v725 = vpack.c.b16 %v705, %v703
      %v726 = vpack.c.b16 %v706, %v704
      %v727 = vpack.c.b16 %v709, %v707
      %v728 = vpack.c.b16 %v710, %v708
      %v729 = vpack.c.b16 %v713, %v711
      %v730 = vpack.c.b16 %v714, %v712
      %747 = vmatprep.subr.bf16.mxu0 0
      %748 = vmatpush1.bf16.msra.mxu0 %v635
      %749 = vmatprep.subr.bf16.mxu0 0
      %750 = vmatpush1.bf16.msra.mxu0 %v636
      %751 = vmatprep.subr.bf16.mxu0 0
      %752 = vmatpush1.bf16.msra.mxu0 %v637
      %753 = vmatprep.subr.bf16.mxu0 0
      %754 = vmatpush1.bf16.msra.mxu0 %v638
      %755 = vmatprep.subr.bf16.mxu0 0
      %756 = vmatpush1.bf16.msra.mxu0 %v639
      %757 = vmatprep.subr.bf16.mxu0 0
      %758 = vmatpush1.bf16.msra.mxu0 %v640
      %759 = vmatprep.subr.bf16.mxu0 0
      %760 = vmatpush1.bf16.msra.mxu0 %v641
      %761 = vmatprep.subr.bf16.mxu0 0
      %762 = vmatpush1.bf16.msra.mxu0 %v642
      %763 = vmatprep.subr.bf16.mxu0 0
      %764 = vmatpush1.bf16.msra.mxu0 %v643
      %765 = vmatprep.subr.bf16.mxu0 0
      %766 = vmatpush1.bf16.msra.mxu0 %v644
      %767 = vmatprep.subr.bf16.mxu0 0
      %768 = vmatpush1.bf16.msra.mxu0 %v645
      %769 = vmatprep.subr.bf16.mxu0 0
      %770 = vmatpush1.bf16.msra.mxu0 %v646
      %771 = vmatprep.subr.bf16.mxu0 0
      %772 = vmatpush1.bf16.msra.mxu0 %v647
      %773 = vmatprep.subr.bf16.mxu0 0
      %774 = vmatpush1.bf16.msra.mxu0 %v648
      %775 = vmatprep.subr.bf16.mxu0 0
      %776 = vmatpush1.bf16.msra.mxu0 %v649
      %777 = vmatprep.subr.bf16.mxu0 0
      %778 = vmatpush1.bf16.msra.mxu0 %v650
      %779 = vmatprep.mubr.bf16.mxu0 %v716
      %780 = vmatmul.mubr.bf16.gmra.mrb[0].mxu0 %v715
      %v781 = vpop.f32.mrb[0].mxu0
      %v782 = vadd.f32 0.0, %v781
      %v783 = vpop.f32.mrb[0].mxu0
      %v784 = vpop.f32.mrb[0].mxu0
      %v785 = vadd.f32 0.0, %v784
      %v786 = vpop.f32.mrb[0].mxu0
      %787 = vmatprep.mubr.bf16.mxu0 %v718
      %788 = vmatmul.mubr.bf16.gmra.mrb[0].mxu0 %v717
      %v789 = vpop.f32.mrb[0].mxu0
      %v790 = vadd.f32 0.0, %v789
      %v791 = vpop.f32.mrb[0].mxu0
      %v792 = vpop.f32.mrb[0].mxu0
      %v793 = vadd.f32 0.0, %v792
      %v794 = vpop.f32.mrb[0].mxu0
      %795 = vmatprep.mubr.bf16.mxu0 %v720
      %796 = vmatmul.mubr.bf16.gmra.mrb[0].mxu0 %v719
      %v797 = vpop.f32.mrb[0].mxu0
      %v798 = vadd.f32 0.0, %v797
      %v799 = vpop.f32.mrb[0].mxu0
      %v800 = vpop.f32.mrb[0].mxu0
      %v801 = vadd.f32 0.0, %v800
      %v802 = vpop.f32.mrb[0].mxu0
      %803 = vmatprep.mubr.bf16.mxu0 %v722
      %804 = vmatmul.mubr.bf16.gmra.mrb[0].mxu0 %v721
      %v805 = vpop.f32.mrb[0].mxu0
      %v806 = vadd.f32 0.0, %v805
      %v807 = vpop.f32.mrb[0].mxu0
      %v808 = vpop.f32.mrb[0].mxu0
      %v809 = vadd.f32 0.0, %v808
      %v810 = vpop.f32.mrb[0].mxu0
      %811 = vmatprep.mubr.bf16.mxu0 %v724
      %812 = vmatmul.mubr.bf16.gmra.mrb[0].mxu0 %v723
      %v813 = vpop.f32.mrb[0].mxu0
      %v814 = vadd.f32 0.0, %v813
      %v815 = vpop.f32.mrb[0].mxu0
      %v816 = vpop.f32.mrb[0].mxu0
      %v817 = vadd.f32 0.0, %v816
      %v818 = vpop.f32.mrb[0].mxu0
      %819 = vmatprep.mubr.bf16.mxu0 %v726
      %820 = vmatmul.mubr.bf16.gmra.mrb[0].mxu0 %v725
      %v821 = vpop.f32.mrb[0].mxu0
      %v822 = vadd.f32 0.0, %v821
      %v823 = vpop.f32.mrb[0].mxu0
      %v824 = vpop.f32.mrb[0].mxu0
      %v825 = vadd.f32 0.0, %v824
      %v826 = vpop.f32.mrb[0].mxu0
      %827 = vmatprep.mubr.bf16.mxu0 %v728
      %828 = vmatmul.mubr.bf16.gmra.mrb[0].mxu0 %v727
      %v829 = vpop.f32.mrb[0].mxu0
      %v830 = vadd.f32 0.0, %v829
      %v831 = vpop.f32.mrb[0].mxu0
      %v832 = vpop.f32.mrb[0].mxu0
      %v833 = vadd.f32 0.0, %v832
      %v834 = vpop.f32.mrb[0].mxu0
      %835 = vmatprep.mubr.bf16.mxu0 %v730
      %836 = vmatmul.mubr.bf16.gmra.mrb[0].mxu0 %v729
      %v837 = vpop.f32.mrb[0].mxu0
      %v838 = vadd.f32 0.0, %v837
      %v839 = vpop.f32.mrb[0].mxu0
      %v840 = vpop.f32.mrb[0].mxu0
      %v841 = vadd.f32 0.0, %v840
      %v842 = vpop.f32.mrb[0].mxu0
      %843 = vdwg.mxu0
      %v844 = vadd.f32 %v651, %v782
      %v845 = vadd.f32 %v652, %v785
      %v846 = vadd.f32 %v653, %v790
      %v847 = vadd.f32 %v654, %v793
      %v848 = vadd.f32 %v655, %v798
      %v849 = vadd.f32 %v656, %v801
      %v850 = vadd.f32 %v657, %v806
      %v851 = vadd.f32 %v658, %v809
      %v852 = vadd.f32 %v659, %v814
      %v853 = vadd.f32 %v660, %v817
      %v854 = vadd.f32 %v661, %v822
      %v855 = vadd.f32 %v662, %v825
      %v856 = vadd.f32 %v663, %v830
      %v857 = vadd.f32 %v664, %v833
      %v858 = vadd.f32 %v665, %v838
      %v859 = vadd.f32 %v666, %v841
      %vm860 = vcmask 130048
      %861 = vst.msk [vmem:[#allocation2] sm:$0xff] %vm860, %v844
      %862 = vst.msk [vmem:[#allocation2 + $0x8] sm:$0xff] %vm860, %v845
      %863 = vst.msk [vmem:[#allocation2 + $0x10] sm:$0xff] %vm860, %v846
      %864 = vst.msk [vmem:[#allocation2 + $0x18] sm:$0xff] %vm860, %v847
      %865 = vst.msk [vmem:[#allocation2 + $0x20] sm:$0xff] %vm860, %v848
      %866 = vst.msk [vmem:[#allocation2 + $0x28] sm:$0xff] %vm860, %v849
      %867 = vst.msk [vmem:[#allocation2 + $0x30] sm:$0xff] %vm860, %v850
      %868 = vst.msk [vmem:[#allocation2 + $0x38] sm:$0xff] %vm860, %v851
      %869 = vst.msk [vmem:[#allocation2 + $0x40] sm:$0xff] %vm860, %v852
      %870 = vst.msk [vmem:[#allocation2 + $0x48] sm:$0xff] %vm860, %v853
      %871 = vst.msk [vmem:[#allocation2 + $0x50] sm:$0xff] %vm860, %v854
      %872 = vst.msk [vmem:[#allocation2 + $0x58] sm:$0xff] %vm860, %v855
      %873 = vst.msk [vmem:[#allocation2 + $0x60] sm:$0xff] %vm860, %v856
      %874 = vst.msk [vmem:[#allocation2 + $0x68] sm:$0xff] %vm860, %v857
      %875 = vst.msk [vmem:[#allocation2 + $0x70] sm:$0xff] %vm860, %v858
      %876 = vst.msk [vmem:[#allocation2 + $0x78] sm:$0xff] %vm860, %v859
      // Predicated region
      $region45: #{gcn_forward.3} parent=39 // pred_check
        %p877 = pneg %p326
      $region46: #{gcn_forward.3} parent=39 // pred_check_branch
        %879 = sbr.rel (%p877) target = $region48
      $region47: #{gcn_forward.3} parent=39 // pred_region
        %v880 = vld [vmem:[#allocation2] sm:$0xff]
        %v881 = vld [vmem:[#allocation2 + $0x8] sm:$0xff]
        %v882 = vld [vmem:[#allocation2 + $0x10] sm:$0xff]
        %v883 = vld [vmem:[#allocation2 + $0x18] sm:$0xff]
        %v884 = vld [vmem:[#allocation2 + $0x20] sm:$0xff]
        %v885 = vld [vmem:[#allocation2 + $0x28] sm:$0xff]
        %v886 = vld [vmem:[#allocation2 + $0x30] sm:$0xff]
        %v887 = vld [vmem:[#allocation2 + $0x38] sm:$0xff]
        %v888 = vld [vmem:[#allocation2 + $0x40] sm:$0xff]
        %v889 = vld [vmem:[#allocation2 + $0x48] sm:$0xff]
        %v890 = vld [vmem:[#allocation2 + $0x50] sm:$0xff]
        %v891 = vld [vmem:[#allocation2 + $0x58] sm:$0xff]
        %v892 = vld [vmem:[#allocation2 + $0x60] sm:$0xff]
        %v893 = vld [vmem:[#allocation2 + $0x68] sm:$0xff]
        %v894 = vld [vmem:[#allocation2 + $0x70] sm:$0xff]
        %v895 = vld [vmem:[#allocation2 + $0x78] sm:$0xff]
        %v896 = vld [vmem:[%s317] sm:$0xff]
        %v897 = vld [vmem:[%s317 + $0x8] sm:$0xff]
        %v898 = vld [vmem:[%s317 + $0x10] sm:$0xff]
        %v899 = vld [vmem:[%s317 + $0x18] sm:$0xff]
        %v900 = vld [vmem:[%s317 + $0x20] sm:$0xff]
        %v901 = vld [vmem:[%s317 + $0x28] sm:$0xff]
        %v902 = vld [vmem:[%s317 + $0x30] sm:$0xff]
        %v903 = vld [vmem:[%s317 + $0x38] sm:$0xff]
        %v904 = vld [vmem:[%s317 + $0x40] sm:$0xff]
        %v905 = vld [vmem:[%s317 + $0x48] sm:$0xff]
        %v906 = vld [vmem:[%s317 + $0x50] sm:$0xff]
        %v907 = vld [vmem:[%s317 + $0x58] sm:$0xff]
        %v908 = vld [vmem:[%s317 + $0x60] sm:$0xff]
        %v909 = vld [vmem:[%s317 + $0x68] sm:$0xff]
        %v910 = vld [vmem:[%s317 + $0x70] sm:$0xff]
        %v911 = vld [vmem:[%s317 + $0x78] sm:$0xff]
        %913 = vset.pattern.permute.xlu0 0
        %914 = vperm.xlu0 %913, %v896
        %v915 = vpop.permute.xlu0 %914
        %918 = vset.pattern.permute.xlu0 0
        %919 = vperm.xlu0 %918, %v897
        %v920 = vpop.permute.xlu0 %919
        %923 = vset.pattern.permute.xlu0 0
        %924 = vperm.xlu0 %923, %v898
        %v925 = vpop.permute.xlu0 %924
        %928 = vset.pattern.permute.xlu0 0
        %929 = vperm.xlu0 %928, %v899
        %v930 = vpop.permute.xlu0 %929
        %933 = vset.pattern.permute.xlu0 0
        %934 = vperm.xlu0 %933, %v900
        %v935 = vpop.permute.xlu0 %934
        %938 = vset.pattern.permute.xlu0 0
        %939 = vperm.xlu0 %938, %v901
        %v940 = vpop.permute.xlu0 %939
        %943 = vset.pattern.permute.xlu0 0
        %944 = vperm.xlu0 %943, %v902
        %v945 = vpop.permute.xlu0 %944
        %948 = vset.pattern.permute.xlu0 0
        %949 = vperm.xlu0 %948, %v903
        %v950 = vpop.permute.xlu0 %949
        %953 = vset.pattern.permute.xlu0 0
        %954 = vperm.xlu0 %953, %v904
        %v955 = vpop.permute.xlu0 %954
        %958 = vset.pattern.permute.xlu0 0
        %959 = vperm.xlu0 %958, %v905
        %v960 = vpop.permute.xlu0 %959
        %963 = vset.pattern.permute.xlu0 0
        %964 = vperm.xlu0 %963, %v906
        %v965 = vpop.permute.xlu0 %964
        %968 = vset.pattern.permute.xlu0 0
        %969 = vperm.xlu0 %968, %v907
        %v970 = vpop.permute.xlu0 %969
        %973 = vset.pattern.permute.xlu0 0
        %974 = vperm.xlu0 %973, %v908
        %v975 = vpop.permute.xlu0 %974
        %978 = vset.pattern.permute.xlu0 0
        %979 = vperm.xlu0 %978, %v909
        %v980 = vpop.permute.xlu0 %979
        %983 = vset.pattern.permute.xlu0 0
        %984 = vperm.xlu0 %983, %v910
        %v985 = vpop.permute.xlu0 %984
        %988 = vset.pattern.permute.xlu0 0
        %989 = vperm.xlu0 %988, %v911
        %v990 = vpop.permute.xlu0 %989
        %v992 = vmul.f32 %v880, %v915
        %v993 = vmul.f32 %v881, %v920
        %v994 = vmul.f32 %v882, %v925
        %v995 = vmul.f32 %v883, %v930
        %v996 = vmul.f32 %v884, %v935
        %v997 = vmul.f32 %v885, %v940
        %v998 = vmul.f32 %v886, %v945
        %v999 = vmul.f32 %v887, %v950
        %v1000 = vmul.f32 %v888, %v955
        %v1001 = vmul.f32 %v889, %v960
        %v1002 = vmul.f32 %v890, %v965
        %v1003 = vmul.f32 %v891, %v970
        %v1004 = vmul.f32 %v892, %v975
        %v1005 = vmul.f32 %v893, %v980
        %v1006 = vmul.f32 %v894, %v985
        %v1007 = vmul.f32 %v895, %v990
        %v1008 = vld [vmem:[%s4] sm:$0x1]
        %v1010 = vlaneseq
        %v1011 = vshrl.u32 %v1010, 7
        %v1012 = vsub.s32 0, %v1011
        %v1013 = vrot.slane %v1008, %v1012
        %v1015 = vadd.f32 %v992, %v1013
        %v1016 = vadd.f32 %v993, %v1013
        %v1017 = vadd.f32 %v994, %v1013
        %v1018 = vadd.f32 %v995, %v1013
        %v1019 = vadd.f32 %v996, %v1013
        %v1020 = vadd.f32 %v997, %v1013
        %v1021 = vadd.f32 %v998, %v1013
        %v1022 = vadd.f32 %v999, %v1013
        %v1023 = vadd.f32 %v1000, %v1013
        %v1024 = vadd.f32 %v1001, %v1013
        %v1025 = vadd.f32 %v1002, %v1013
        %v1026 = vadd.f32 %v1003, %v1013
        %v1027 = vadd.f32 %v1004, %v1013
        %v1028 = vadd.f32 %v1005, %v1013
        %v1029 = vadd.f32 %v1006, %v1013
        %v1030 = vadd.f32 %v1007, %v1013
        %v1031 = vmax.f32 %v1015, 0.0
        %v1032 = vmax.f32 %v1016, 0.0
        %v1033 = vmax.f32 %v1017, 0.0
        %v1034 = vmax.f32 %v1018, 0.0
        %v1035 = vmax.f32 %v1019, 0.0
        %v1036 = vmax.f32 %v1020, 0.0
        %v1037 = vmax.f32 %v1021, 0.0
        %v1038 = vmax.f32 %v1022, 0.0
        %v1039 = vmax.f32 %v1023, 0.0
        %v1040 = vmax.f32 %v1024, 0.0
        %v1041 = vmax.f32 %v1025, 0.0
        %v1042 = vmax.f32 %v1026, 0.0
        %v1043 = vmax.f32 %v1027, 0.0
        %v1044 = vmax.f32 %v1028, 0.0
        %v1045 = vmax.f32 %v1029, 0.0
        %v1046 = vmax.f32 %v1030, 0.0
        %1047 = vst.msk [vmem:[%s323] sm:$0xff] %vm860, %v1031
        %1048 = vst.msk [vmem:[%s323 + $0x8] sm:$0xff] %vm860, %v1032
        %1049 = vst.msk [vmem:[%s323 + $0x10] sm:$0xff] %vm860, %v1033
        %1050 = vst.msk [vmem:[%s323 + $0x18] sm:$0xff] %vm860, %v1034
        %1051 = vst.msk [vmem:[%s323 + $0x20] sm:$0xff] %vm860, %v1035
        %1052 = vst.msk [vmem:[%s323 + $0x28] sm:$0xff] %vm860, %v1036
        %1053 = vst.msk [vmem:[%s323 + $0x30] sm:$0xff] %vm860, %v1037
        %1054 = vst.msk [vmem:[%s323 + $0x38] sm:$0xff] %vm860, %v1038
        %1055 = vst.msk [vmem:[%s323 + $0x40] sm:$0xff] %vm860, %v1039
        %1056 = vst.msk [vmem:[%s323 + $0x48] sm:$0xff] %vm860, %v1040
        %1057 = vst.msk [vmem:[%s323 + $0x50] sm:$0xff] %vm860, %v1041
        %1058 = vst.msk [vmem:[%s323 + $0x58] sm:$0xff] %vm860, %v1042
        %1059 = vst.msk [vmem:[%s323 + $0x60] sm:$0xff] %vm860, %v1043
        %1060 = vst.msk [vmem:[%s323 + $0x68] sm:$0xff] %vm860, %v1044
        %1061 = vst.msk [vmem:[%s323 + $0x70] sm:$0xff] %vm860, %v1045
        %1062 = vst.msk [vmem:[%s323 + $0x78] sm:$0xff] %vm860, %v1046
      $region48: #{gcn_forward.3} parent=39 // pred_fallthru
        _
      %s1063 = smul.u32 16, %s20
      %p1064 = scmp.lt.s32.totalorder %s1063, 31
      %s1065 = scalar_select %p1064, %s1063, 31
      %s1066 = smul.addr %s1065, 8
      %s1067 = scalar_lea.vmem %s5, %s1066
      // Predicated region
      $region49: #{gcn_forward.3} parent=39 // pred_check
        %p1068 = pneg %p173
      $region50: #{gcn_forward.3} parent=39 // pred_check_branch
        %1070 = sbr.rel (%p1068) target = $region52
      $region51: #{gcn_forward.3} parent=39 // pred_region
        %s1071 = smul.u32 16, %s20
      $region52: #{gcn_forward.3} parent=39 // pred_fallthru
        _
    $region40: #{gcn_forward.3} parent=5 // pred_fallthru
      _
    %p1072 = scmp.le.s32.totalorder 2, %s11
    // Predicated region
    $region53: #{gcn_forward.3} parent=5 // pred_check
      %p1073 = pneg %p1072
    $region54: #{gcn_forward.3} parent=5 // pred_check_branch
      %1075 = sbr.rel (%p1073) target = $region56
    $region55: #{gcn_forward.3} parent=5 // pred_region
      %s1076 = ssub.s32 %s11, 2
      // Predicated region
      $region57: #{gcn_forward.3} parent=55 // pred_check
        %p1077 = pneg %p179
      $region58: #{gcn_forward.3} parent=55 // pred_check_branch
        %1079 = sbr.rel (%p1077) target = $region60
      $region59: #{gcn_forward.3} parent=55 // pred_region
        %s1080 = smul.u32 16, %s22
        %p1081 = scmp.lt.s32.totalorder %s1080, 31
        %s1082 = scalar_select %p1081, %s1080, 31
        %s1083 = smul.addr %s1082, 8
        %s1084 = scalar_lea.vmem %s5, %s1083
      $region60: #{gcn_forward.3} parent=55 // pred_fallthru
        _
    $region56: #{gcn_forward.3} parent=5 // pred_fallthru
      _
  $region6: #{gcn_forward.3} parent=0 // loop_footer
    %s15 = sadd.s32 1, %s11
  $region7: #{gcn_forward.3} parent=0 // loop_footer_branch
    %10 = sbr.rel target = $region3
  $region8: #{gcn_forward.3} parent=0 // loop_exit
    _

</llo_original>
